<compile_context>
chip_gen: v7x
topology: tpu7x:2x2x1
jax: 0.10.0
libtpu: 0.0.40
codegen_flags: <defaults>
</compile_context>

<pallas_src>
import functools

import jax
import jax.numpy as jnp
from jax import lax
from jax.experimental import pallas as pl
from jax.experimental.pallas import tpu as pltpu

EPS = 1e-5
COUT = 3                  # output channels per branch
CTOT = 4                  # stacked input channels: 3 rgb + 1 dem
OTOT = 2 * COUT           # stacked output channels: 3 rgb + 3 dem
# 3x3 taps as (dh, dw) offsets, enumerated in flattened OIHW kernel order.
_TAPS = tuple((kh - 1, kw - 1) for kh in range(3) for kw in range(3))


def _fused_preprocess_kernel(x_ref, mask_ref, w_ref, gamma_ref, beta_ref,
                             out_ref, *, W):
    """Fused rgb+dem 3x3 conv (zero pad=1) + batch-stat BN + ReLU.

    x_ref     : (CTOT, L) f32 VMEM, L = N*H*W, rows = [rgb c0, rgb c1, rgb c2, dem c0]
    mask_ref  : (9, L)    f32 VMEM, per-tap zero-pad boundary masks ({0,1})
    w_ref     : (CTOT*9, OTOT, 1) f32 VMEM, combined conv weights (block structure:
                rgb outputs only read rgb channels, dem outputs only the dem channel)
    gamma_ref : (OTOT, 1) f32 VMEM   beta_ref : (OTOT, 1) f32 VMEM
    out_ref   : (OTOT, L) f32 VMEM
    """
    L = x_ref.shape[1]
    slab = x_ref[...]                                     # (CTOT, L)
    acc = jnp.zeros(out_ref.shape, jnp.float32)           # (OTOT, L)

    for t, (dh, dw) in enumerate(_TAPS):
        s = dh * W + dw                                   # want x[q + s]
        if s == 0:
            tap = slab                                    # center tap: no roll, no mask
        else:
            # One lane rotation (XLU) + one mask multiply for ALL channels of
            # BOTH branches.  Cross-image wrap-around positions are exactly the
            # out-of-bounds positions, so the zero-pad mask also cleans them up.
            tap = pltpu.roll(slab, (-s) % L, axis=1) * mask_ref[t, :]
        for c in range(CTOT):
            # Single broadcasted FMA per (input channel, tap):
            # (OTOT,1) weight column x (1,L) tap row -> (OTOT,L) accumulator.
            acc = acc + w_ref[c * 9 + t] * tap[c:c + 1, :]

    # Conv bias omitted: BN's batch-mean subtraction cancels it exactly.
    # One-pass training-mode BN stats (biased variance), per output channel.
    mean = jnp.mean(acc, axis=1, keepdims=True)           # (OTOT, 1)
    mean_sq = jnp.mean(acc * acc, axis=1, keepdims=True)  # (OTOT, 1)
    var = mean_sq - mean * mean
    scale = gamma_ref[...] * lax.rsqrt(var + EPS)
    shift = beta_ref[...] - mean * scale
    # Single dense (OTOT, L) store for both branches.
    out_ref[...] = jnp.maximum(acc * scale + shift, 0.0)


def preprocessing_module(params, rgb, dem):
    """rgb: (N,3,H,W), dem: (N,1,H,W). Returns (rgb_out, dem_out), both (N,3,H,W)."""
    N, _, H, W = rgb.shape
    HW = H * W
    L = N * HW

    # Channel-major, lane-dense input slab: (CTOT, N*H*W).
    x_slab = jnp.concatenate(
        [rgb.astype(jnp.float32).transpose(1, 0, 2, 3).reshape(3, L),
         dem.astype(jnp.float32).transpose(1, 0, 2, 3).reshape(1, L)], axis=0)

    # Host-precomputed per-tap boundary masks (batch independent, tiled over N).
    p = jnp.arange(HW, dtype=jnp.int32)
    row, col = p // W, p % W
    masks = jnp.stack([
        ((row + dh >= 0) & (row + dh < H) & (col + dw >= 0) & (col + dw < W))
        for dh, dw in _TAPS]).astype(jnp.float32)          # (9, HW)
    masks = jnp.tile(masks, (1, N))                        # (9, L)

    # Combined conv weights, laid out so the kernel reads ready-made (OTOT,1)
    # weight columns (no in-kernel relayout): w_all[c, t, o].
    rgb_w = params["rgb_w"].astype(jnp.float32)            # (3,3,3,3) OIHW
    dem_w = params["dem_w"].astype(jnp.float32)            # (3,1,3,3) OIHW
    w_all = jnp.zeros((CTOT, 9, OTOT), jnp.float32)
    w_all = w_all.at[:3, :, :3].set(rgb_w.reshape(3, 3, 9).transpose(1, 2, 0))
    w_all = w_all.at[3, :, 3:].set(dem_w.reshape(3, 9).transpose(1, 0))
    w_all = w_all.reshape(CTOT * 9, OTOT, 1)

    gamma = jnp.concatenate([params["rgb_gamma"], params["dem_gamma"]]
                            ).astype(jnp.float32).reshape(OTOT, 1)
    beta = jnp.concatenate([params["rgb_beta"], params["dem_beta"]]
                           ).astype(jnp.float32).reshape(OTOT, 1)

    vmem = pl.BlockSpec(memory_space=pltpu.MemorySpace.VMEM)
    kernel = functools.partial(_fused_preprocess_kernel, W=W)
    y = pl.pallas_call(
        kernel,
        out_shape=jax.ShapeDtypeStruct((OTOT, L), jnp.float32),
        in_specs=[vmem, vmem, vmem, vmem, vmem],
        out_specs=vmem,
    )(x_slab, masks, w_all, gamma, beta)

    y = y.reshape(OTOT, N, H, W)
    rgb_out = y[:COUT].transpose(1, 0, 2, 3)
    dem_out = y[COUT:].transpose(1, 0, 2, 3)
    return rgb_out, dem_out


def _init_params(key):
    ks = jax.random.split(key, 8)

    def conv_init(kw, kb, cout, cin):
        fan_in = cin * 3 * 3
        bound = 1.0 / jnp.sqrt(fan_in)
        w = jax.random.uniform(kw, (cout, cin, 3, 3), jnp.float32, -bound, bound)
        b = jax.random.uniform(kb, (cout,), jnp.float32, -bound, bound)
        return w, b

    rgb_w, rgb_b = conv_init(ks[0], ks[1], 3, 3)
    dem_w, dem_b = conv_init(ks[2], ks[3], 3, 1)
    return {
        "rgb_w": rgb_w, "rgb_b": rgb_b,
        "rgb_gamma": 1.0 + 0.1 * jax.random.normal(ks[4], (3,), jnp.float32),
        "rgb_beta": 0.1 * jax.random.normal(ks[5], (3,), jnp.float32),
        "dem_w": dem_w, "dem_b": dem_b,
        "dem_gamma": 1.0 + 0.1 * jax.random.normal(ks[6], (3,), jnp.float32),
        "dem_beta": 0.1 * jax.random.normal(ks[7], (3,), jnp.float32),
    }


def _ref_branch(x, w, b, gamma, beta):
    # Pure-JAX reference (PyTorch training-mode conv + BN + ReLU).  Keeps the
    # conv bias; BN's mean subtraction cancels it, so it matches the bias-free
    # kernel.  HIGHEST precision keeps the f32 reference comparable to the
    # VPU's true-f32 math.
    y = lax.conv_general_dilated(
        x.astype(jnp.float32), w.astype(jnp.float32), (1, 1), "SAME",
        dimension_numbers=("NCHW", "OIHW", "NCHW"),
        precision=lax.Precision.HIGHEST) + b[None, :, None, None]
    mean = y.mean(axis=(0, 2, 3), keepdims=True)
    var = ((y - mean) ** 2).mean(axis=(0, 2, 3), keepdims=True)
    y = (y - mean) / jnp.sqrt(var + EPS) * gamma[None, :, None, None] \
        + beta[None, :, None, None]
    return jnp.maximum(y, 0.0)


if __name__ == "__main__":
    key = jax.random.PRNGKey(0)
    k_params, k_rgb, k_dem = jax.random.split(key, 3)

    params = _init_params(k_params)
    rgb = jax.random.normal(k_rgb, (2, 3, 16, 16), jnp.float32)
    dem = jax.random.normal(k_dem, (2, 1, 16, 16), jnp.float32)

    fwd = jax.jit(functools.partial(preprocessing_module, params))
    rgb_out, dem_out = fwd(rgb, dem)
    jax.block_until_ready((rgb_out, dem_out))

    # Correctness check vs. pure-JAX reference.
    rgb_ref = _ref_branch(rgb, params["rgb_w"], params["rgb_b"],
                          params["rgb_gamma"], params["rgb_beta"])
    dem_ref = _ref_branch(dem, params["dem_w"], params["dem_b"],
                          params["dem_gamma"], params["dem_beta"])
    assert rgb_out.shape == (2, 3, 16, 16) and dem_out.shape == (2, 3, 16, 16)
    assert jnp.allclose(rgb_out, rgb_ref, atol=5e-4, rtol=5e-4)
    assert jnp.allclose(dem_out, dem_ref, atol=5e-4, rtol=5e-4)

    print("KERNEL_OK")
</pallas_src>

<mosaic_0001>
module attributes {stable_mosaic.version = 11 : i64} {
  func.func @_fused_preprocess_kernel(%arg0: memref<4x512xf32, #tpu.memory_space<vmem>>, %arg1: memref<9x512xf32, #tpu.memory_space<vmem>>, %arg2: memref<36x6x1xf32, #tpu.memory_space<vmem>>, %arg3: memref<6x1xf32, #tpu.memory_space<vmem>>, %arg4: memref<6x1xf32, #tpu.memory_space<vmem>>, %arg5: memref<6x512xf32, #tpu.memory_space<vmem>>) attributes {dimension_semantics = [], scalar_prefetch = 0 : i64, scratch_operands = 0 : i64, tpu.core_type = #tpu.core_type<tc>} {
    %c0 = arith.constant 0 : index
    %c0_0 = arith.constant 0 : index
    %0 = vector.load %arg0[%c0, %c0_0] : memref<4x512xf32, #tpu.memory_space<vmem>>, vector<4x512xf32>
    %cst = arith.constant 0.000000e+00 : f32
    %1 = vector.broadcast %cst : f32 to vector<6x512xf32>
    %c17_i32 = arith.constant 17 : i32
    %2 = tpu.dynamic_rotate %0 by %c17_i32 dim 1 : vector<4x512xf32>, i32 -> vector<4x512xf32>
    %c0_1 = arith.constant 0 : index
    %c0_2 = arith.constant 0 : index
    %3 = vector.load %arg1[%c0_1, %c0_2] : memref<9x512xf32, #tpu.memory_space<vmem>>, vector<1x512xf32>
    %4 = vector.shape_cast %3 : vector<1x512xf32> to vector<512xf32>
    %5 = vector.shape_cast %4 : vector<512xf32> to vector<1x512xf32>
    %6 = vector.broadcast %5 : vector<1x512xf32> to vector<4x512xf32>
    %7 = arith.mulf %2, %6 : vector<4x512xf32>
    %c0_3 = arith.constant 0 : index
    %c0_4 = arith.constant 0 : index
    %c0_5 = arith.constant 0 : index
    %8 = vector.load %arg2[%c0_3, %c0_4, %c0_5] : memref<36x6x1xf32, #tpu.memory_space<vmem>>, vector<1x6x1xf32>
    %9 = vector.shape_cast %8 : vector<1x6x1xf32> to vector<6x1xf32>
    %10 = vector.extract_strided_slice %7 {offsets = [0, 0], sizes = [1, 512], strides = [1, 1]} : vector<4x512xf32> to vector<1x512xf32>
    %11 = vector.broadcast %9 : vector<6x1xf32> to vector<6x512xf32>
    %12 = vector.broadcast %10 : vector<1x512xf32> to vector<6x512xf32>
    %13 = arith.mulf %11, %12 : vector<6x512xf32>
    %14 = arith.addf %1, %13 : vector<6x512xf32>
    %c9 = arith.constant 9 : index
    %c0_6 = arith.constant 0 : index
    %c0_7 = arith.constant 0 : index
    %15 = vector.load %arg2[%c9, %c0_6, %c0_7] : memref<36x6x1xf32, #tpu.memory_space<vmem>>, vector<1x6x1xf32>
    %16 = vector.shape_cast %15 : vector<1x6x1xf32> to vector<6x1xf32>
    %17 = vector.extract_strided_slice %7 {offsets = [1, 0], sizes = [1, 512], strides = [1, 1]} : vector<4x512xf32> to vector<1x512xf32>
    %18 = vector.broadcast %16 : vector<6x1xf32> to vector<6x512xf32>
    %19 = vector.broadcast %17 : vector<1x512xf32> to vector<6x512xf32>
    %20 = arith.mulf %18, %19 : vector<6x512xf32>
    %21 = arith.addf %14, %20 : vector<6x512xf32>
    %c18 = arith.constant 18 : index
    %c0_8 = arith.constant 0 : index
    %c0_9 = arith.constant 0 : index
    %22 = vector.load %arg2[%c18, %c0_8, %c0_9] : memref<36x6x1xf32, #tpu.memory_space<vmem>>, vector<1x6x1xf32>
    %23 = vector.shape_cast %22 : vector<1x6x1xf32> to vector<6x1xf32>
    %24 = vector.extract_strided_slice %7 {offsets = [2, 0], sizes = [1, 512], strides = [1, 1]} : vector<4x512xf32> to vector<1x512xf32>
    %25 = vector.broadcast %23 : vector<6x1xf32> to vector<6x512xf32>
    %26 = vector.broadcast %24 : vector<1x512xf32> to vector<6x512xf32>
    %27 = arith.mulf %25, %26 : vector<6x512xf32>
    %28 = arith.addf %21, %27 : vector<6x512xf32>
    %c27 = arith.constant 27 : index
    %c0_10 = arith.constant 0 : index
    %c0_11 = arith.constant 0 : index
    %29 = vector.load %arg2[%c27, %c0_10, %c0_11] : memref<36x6x1xf32, #tpu.memory_space<vmem>>, vector<1x6x1xf32>
    %30 = vector.shape_cast %29 : vector<1x6x1xf32> to vector<6x1xf32>
    %31 = vector.extract_strided_slice %7 {offsets = [3, 0], sizes = [1, 512], strides = [1, 1]} : vector<4x512xf32> to vector<1x512xf32>
    %32 = vector.broadcast %30 : vector<6x1xf32> to vector<6x512xf32>
    %33 = vector.broadcast %31 : vector<1x512xf32> to vector<6x512xf32>
    %34 = arith.mulf %32, %33 : vector<6x512xf32>
    %35 = arith.addf %28, %34 : vector<6x512xf32>
    %c16_i32 = arith.constant 16 : i32
    %36 = tpu.dynamic_rotate %0 by %c16_i32 dim 1 : vector<4x512xf32>, i32 -> vector<4x512xf32>
    %c1 = arith.constant 1 : index
    %c0_12 = arith.constant 0 : index
    %37 = vector.load %arg1[%c1, %c0_12] : memref<9x512xf32, #tpu.memory_space<vmem>>, vector<1x512xf32>
    %38 = vector.shape_cast %37 : vector<1x512xf32> to vector<512xf32>
    %39 = vector.shape_cast %38 : vector<512xf32> to vector<1x512xf32>
    %40 = vector.broadcast %39 : vector<1x512xf32> to vector<4x512xf32>
    %41 = arith.mulf %36, %40 : vector<4x512xf32>
    %c1_13 = arith.constant 1 : index
    %c0_14 = arith.constant 0 : index
    %c0_15 = arith.constant 0 : index
    %42 = vector.load %arg2[%c1_13, %c0_14, %c0_15] : memref<36x6x1xf32, #tpu.memory_space<vmem>>, vector<1x6x1xf32>
    %43 = vector.shape_cast %42 : vector<1x6x1xf32> to vector<6x1xf32>
    %44 = vector.extract_strided_slice %41 {offsets = [0, 0], sizes = [1, 512], strides = [1, 1]} : vector<4x512xf32> to vector<1x512xf32>
    %45 = vector.broadcast %43 : vector<6x1xf32> to vector<6x512xf32>
    %46 = vector.broadcast %44 : vector<1x512xf32> to vector<6x512xf32>
    %47 = arith.mulf %45, %46 : vector<6x512xf32>
    %48 = arith.addf %35, %47 : vector<6x512xf32>
    %c10 = arith.constant 10 : index
    %c0_16 = arith.constant 0 : index
    %c0_17 = arith.constant 0 : index
    %49 = vector.load %arg2[%c10, %c0_16, %c0_17] : memref<36x6x1xf32, #tpu.memory_space<vmem>>, vector<1x6x1xf32>
    %50 = vector.shape_cast %49 : vector<1x6x1xf32> to vector<6x1xf32>
    %51 = vector.extract_strided_slice %41 {offsets = [1, 0], sizes = [1, 512], strides = [1, 1]} : vector<4x512xf32> to vector<1x512xf32>
    %52 = vector.broadcast %50 : vector<6x1xf32> to vector<6x512xf32>
    %53 = vector.broadcast %51 : vector<1x512xf32> to vector<6x512xf32>
    %54 = arith.mulf %52, %53 : vector<6x512xf32>
    %55 = arith.addf %48, %54 : vector<6x512xf32>
    %c19 = arith.constant 19 : index
    %c0_18 = arith.constant 0 : index
    %c0_19 = arith.constant 0 : index
    %56 = vector.load %arg2[%c19, %c0_18, %c0_19] : memref<36x6x1xf32, #tpu.memory_space<vmem>>, vector<1x6x1xf32>
    %57 = vector.shape_cast %56 : vector<1x6x1xf32> to vector<6x1xf32>
    %58 = vector.extract_strided_slice %41 {offsets = [2, 0], sizes = [1, 512], strides = [1, 1]} : vector<4x512xf32> to vector<1x512xf32>
    %59 = vector.broadcast %57 : vector<6x1xf32> to vector<6x512xf32>
    %60 = vector.broadcast %58 : vector<1x512xf32> to vector<6x512xf32>
    %61 = arith.mulf %59, %60 : vector<6x512xf32>
    %62 = arith.addf %55, %61 : vector<6x512xf32>
    %c28 = arith.constant 28 : index
    %c0_20 = arith.constant 0 : index
    %c0_21 = arith.constant 0 : index
    %63 = vector.load %arg2[%c28, %c0_20, %c0_21] : memref<36x6x1xf32, #tpu.memory_space<vmem>>, vector<1x6x1xf32>
    %64 = vector.shape_cast %63 : vector<1x6x1xf32> to vector<6x1xf32>
    %65 = vector.extract_strided_slice %41 {offsets = [3, 0], sizes = [1, 512], strides = [1, 1]} : vector<4x512xf32> to vector<1x512xf32>
    %66 = vector.broadcast %64 : vector<6x1xf32> to vector<6x512xf32>
    %67 = vector.broadcast %65 : vector<1x512xf32> to vector<6x512xf32>
    %68 = arith.mulf %66, %67 : vector<6x512xf32>
    %69 = arith.addf %62, %68 : vector<6x512xf32>
    %c15_i32 = arith.constant 15 : i32
    %70 = tpu.dynamic_rotate %0 by %c15_i32 dim 1 : vector<4x512xf32>, i32 -> vector<4x512xf32>
    %c2 = arith.constant 2 : index
    %c0_22 = arith.constant 0 : index
    %71 = vector.load %arg1[%c2, %c0_22] : memref<9x512xf32, #tpu.memory_space<vmem>>, vector<1x512xf32>
    %72 = vector.shape_cast %71 : vector<1x512xf32> to vector<512xf32>
    %73 = vector.shape_cast %72 : vector<512xf32> to vector<1x512xf32>
    %74 = vector.broadcast %73 : vector<1x512xf32> to vector<4x512xf32>
    %75 = arith.mulf %70, %74 : vector<4x512xf32>
    %c2_23 = arith.constant 2 : index
    %c0_24 = arith.constant 0 : index
    %c0_25 = arith.constant 0 : index
    %76 = vector.load %arg2[%c2_23, %c0_24, %c0_25] : memref<36x6x1xf32, #tpu.memory_space<vmem>>, vector<1x6x1xf32>
    %77 = vector.shape_cast %76 : vector<1x6x1xf32> to vector<6x1xf32>
    %78 = vector.extract_strided_slice %75 {offsets = [0, 0], sizes = [1, 512], strides = [1, 1]} : vector<4x512xf32> to vector<1x512xf32>
    %79 = vector.broadcast %77 : vector<6x1xf32> to vector<6x512xf32>
    %80 = vector.broadcast %78 : vector<1x512xf32> to vector<6x512xf32>
    %81 = arith.mulf %79, %80 : vector<6x512xf32>
    %82 = arith.addf %69, %81 : vector<6x512xf32>
    %c11 = arith.constant 11 : index
    %c0_26 = arith.constant 0 : index
    %c0_27 = arith.constant 0 : index
    %83 = vector.load %arg2[%c11, %c0_26, %c0_27] : memref<36x6x1xf32, #tpu.memory_space<vmem>>, vector<1x6x1xf32>
    %84 = vector.shape_cast %83 : vector<1x6x1xf32> to vector<6x1xf32>
    %85 = vector.extract_strided_slice %75 {offsets = [1, 0], sizes = [1, 512], strides = [1, 1]} : vector<4x512xf32> to vector<1x512xf32>
    %86 = vector.broadcast %84 : vector<6x1xf32> to vector<6x512xf32>
    %87 = vector.broadcast %85 : vector<1x512xf32> to vector<6x512xf32>
    %88 = arith.mulf %86, %87 : vector<6x512xf32>
    %89 = arith.addf %82, %88 : vector<6x512xf32>
    %c20 = arith.constant 20 : index
    %c0_28 = arith.constant 0 : index
    %c0_29 = arith.constant 0 : index
    %90 = vector.load %arg2[%c20, %c0_28, %c0_29] : memref<36x6x1xf32, #tpu.memory_space<vmem>>, vector<1x6x1xf32>
    %91 = vector.shape_cast %90 : vector<1x6x1xf32> to vector<6x1xf32>
    %92 = vector.extract_strided_slice %75 {offsets = [2, 0], sizes = [1, 512], strides = [1, 1]} : vector<4x512xf32> to vector<1x512xf32>
    %93 = vector.broadcast %91 : vector<6x1xf32> to vector<6x512xf32>
    %94 = vector.broadcast %92 : vector<1x512xf32> to vector<6x512xf32>
    %95 = arith.mulf %93, %94 : vector<6x512xf32>
    %96 = arith.addf %89, %95 : vector<6x512xf32>
    %c29 = arith.constant 29 : index
    %c0_30 = arith.constant 0 : index
    %c0_31 = arith.constant 0 : index
    %97 = vector.load %arg2[%c29, %c0_30, %c0_31] : memref<36x6x1xf32, #tpu.memory_space<vmem>>, vector<1x6x1xf32>
    %98 = vector.shape_cast %97 : vector<1x6x1xf32> to vector<6x1xf32>
    %99 = vector.extract_strided_slice %75 {offsets = [3, 0], sizes = [1, 512], strides = [1, 1]} : vector<4x512xf32> to vector<1x512xf32>
    %100 = vector.broadcast %98 : vector<6x1xf32> to vector<6x512xf32>
    %101 = vector.broadcast %99 : vector<1x512xf32> to vector<6x512xf32>
    %102 = arith.mulf %100, %101 : vector<6x512xf32>
    %103 = arith.addf %96, %102 : vector<6x512xf32>
    %c1_i32 = arith.constant 1 : i32
    %104 = tpu.dynamic_rotate %0 by %c1_i32 dim 1 : vector<4x512xf32>, i32 -> vector<4x512xf32>
    %c3 = arith.constant 3 : index
    %c0_32 = arith.constant 0 : index
    %105 = vector.load %arg1[%c3, %c0_32] : memref<9x512xf32, #tpu.memory_space<vmem>>, vector<1x512xf32>
    %106 = vector.shape_cast %105 : vector<1x512xf32> to vector<512xf32>
    %107 = vector.shape_cast %106 : vector<512xf32> to vector<1x512xf32>
    %108 = vector.broadcast %107 : vector<1x512xf32> to vector<4x512xf32>
    %109 = arith.mulf %104, %108 : vector<4x512xf32>
    %c3_33 = arith.constant 3 : index
    %c0_34 = arith.constant 0 : index
    %c0_35 = arith.constant 0 : index
    %110 = vector.load %arg2[%c3_33, %c0_34, %c0_35] : memref<36x6x1xf32, #tpu.memory_space<vmem>>, vector<1x6x1xf32>
    %111 = vector.shape_cast %110 : vector<1x6x1xf32> to vector<6x1xf32>
    %112 = vector.extract_strided_slice %109 {offsets = [0, 0], sizes = [1, 512], strides = [1, 1]} : vector<4x512xf32> to vector<1x512xf32>
    %113 = vector.broadcast %111 : vector<6x1xf32> to vector<6x512xf32>
    %114 = vector.broadcast %112 : vector<1x512xf32> to vector<6x512xf32>
    %115 = arith.mulf %113, %114 : vector<6x512xf32>
    %116 = arith.addf %103, %115 : vector<6x512xf32>
    %c12 = arith.constant 12 : index
    %c0_36 = arith.constant 0 : index
    %c0_37 = arith.constant 0 : index
    %117 = vector.load %arg2[%c12, %c0_36, %c0_37] : memref<36x6x1xf32, #tpu.memory_space<vmem>>, vector<1x6x1xf32>
    %118 = vector.shape_cast %117 : vector<1x6x1xf32> to vector<6x1xf32>
    %119 = vector.extract_strided_slice %109 {offsets = [1, 0], sizes = [1, 512], strides = [1, 1]} : vector<4x512xf32> to vector<1x512xf32>
    %120 = vector.broadcast %118 : vector<6x1xf32> to vector<6x512xf32>
    %121 = vector.broadcast %119 : vector<1x512xf32> to vector<6x512xf32>
    %122 = arith.mulf %120, %121 : vector<6x512xf32>
    %123 = arith.addf %116, %122 : vector<6x512xf32>
    %c21 = arith.constant 21 : index
    %c0_38 = arith.constant 0 : index
    %c0_39 = arith.constant 0 : index
    %124 = vector.load %arg2[%c21, %c0_38, %c0_39] : memref<36x6x1xf32, #tpu.memory_space<vmem>>, vector<1x6x1xf32>
    %125 = vector.shape_cast %124 : vector<1x6x1xf32> to vector<6x1xf32>
    %126 = vector.extract_strided_slice %109 {offsets = [2, 0], sizes = [1, 512], strides = [1, 1]} : vector<4x512xf32> to vector<1x512xf32>
    %127 = vector.broadcast %125 : vector<6x1xf32> to vector<6x512xf32>
    %128 = vector.broadcast %126 : vector<1x512xf32> to vector<6x512xf32>
    %129 = arith.mulf %127, %128 : vector<6x512xf32>
    %130 = arith.addf %123, %129 : vector<6x512xf32>
    %c30 = arith.constant 30 : index
    %c0_40 = arith.constant 0 : index
    %c0_41 = arith.constant 0 : index
    %131 = vector.load %arg2[%c30, %c0_40, %c0_41] : memref<36x6x1xf32, #tpu.memory_space<vmem>>, vector<1x6x1xf32>
    %132 = vector.shape_cast %131 : vector<1x6x1xf32> to vector<6x1xf32>
    %133 = vector.extract_strided_slice %109 {offsets = [3, 0], sizes = [1, 512], strides = [1, 1]} : vector<4x512xf32> to vector<1x512xf32>
    %134 = vector.broadcast %132 : vector<6x1xf32> to vector<6x512xf32>
    %135 = vector.broadcast %133 : vector<1x512xf32> to vector<6x512xf32>
    %136 = arith.mulf %134, %135 : vector<6x512xf32>
    %137 = arith.addf %130, %136 : vector<6x512xf32>
    %c4 = arith.constant 4 : index
    %c0_42 = arith.constant 0 : index
    %c0_43 = arith.constant 0 : index
    %138 = vector.load %arg2[%c4, %c0_42, %c0_43] : memref<36x6x1xf32, #tpu.memory_space<vmem>>, vector<1x6x1xf32>
    %139 = vector.shape_cast %138 : vector<1x6x1xf32> to vector<6x1xf32>
    %140 = vector.extract_strided_slice %0 {offsets = [0, 0], sizes = [1, 512], strides = [1, 1]} : vector<4x512xf32> to vector<1x512xf32>
    %141 = vector.broadcast %139 : vector<6x1xf32> to vector<6x512xf32>
    %142 = vector.broadcast %140 : vector<1x512xf32> to vector<6x512xf32>
    %143 = arith.mulf %141, %142 : vector<6x512xf32>
    %144 = arith.addf %137, %143 : vector<6x512xf32>
    %c13 = arith.constant 13 : index
    %c0_44 = arith.constant 0 : index
    %c0_45 = arith.constant 0 : index
    %145 = vector.load %arg2[%c13, %c0_44, %c0_45] : memref<36x6x1xf32, #tpu.memory_space<vmem>>, vector<1x6x1xf32>
    %146 = vector.shape_cast %145 : vector<1x6x1xf32> to vector<6x1xf32>
    %147 = vector.extract_strided_slice %0 {offsets = [1, 0], sizes = [1, 512], strides = [1, 1]} : vector<4x512xf32> to vector<1x512xf32>
    %148 = vector.broadcast %146 : vector<6x1xf32> to vector<6x512xf32>
    %149 = vector.broadcast %147 : vector<1x512xf32> to vector<6x512xf32>
    %150 = arith.mulf %148, %149 : vector<6x512xf32>
    %151 = arith.addf %144, %150 : vector<6x512xf32>
    %c22 = arith.constant 22 : index
    %c0_46 = arith.constant 0 : index
    %c0_47 = arith.constant 0 : index
    %152 = vector.load %arg2[%c22, %c0_46, %c0_47] : memref<36x6x1xf32, #tpu.memory_space<vmem>>, vector<1x6x1xf32>
    %153 = vector.shape_cast %152 : vector<1x6x1xf32> to vector<6x1xf32>
    %154 = vector.extract_strided_slice %0 {offsets = [2, 0], sizes = [1, 512], strides = [1, 1]} : vector<4x512xf32> to vector<1x512xf32>
    %155 = vector.broadcast %153 : vector<6x1xf32> to vector<6x512xf32>
    %156 = vector.broadcast %154 : vector<1x512xf32> to vector<6x512xf32>
    %157 = arith.mulf %155, %156 : vector<6x512xf32>
    %158 = arith.addf %151, %157 : vector<6x512xf32>
    %c31 = arith.constant 31 : index
    %c0_48 = arith.constant 0 : index
    %c0_49 = arith.constant 0 : index
    %159 = vector.load %arg2[%c31, %c0_48, %c0_49] : memref<36x6x1xf32, #tpu.memory_space<vmem>>, vector<1x6x1xf32>
    %160 = vector.shape_cast %159 : vector<1x6x1xf32> to vector<6x1xf32>
    %161 = vector.extract_strided_slice %0 {offsets = [3, 0], sizes = [1, 512], strides = [1, 1]} : vector<4x512xf32> to vector<1x512xf32>
    %162 = vector.broadcast %160 : vector<6x1xf32> to vector<6x512xf32>
    %163 = vector.broadcast %161 : vector<1x512xf32> to vector<6x512xf32>
    %164 = arith.mulf %162, %163 : vector<6x512xf32>
    %165 = arith.addf %158, %164 : vector<6x512xf32>
    %c511_i32 = arith.constant 511 : i32
    %166 = tpu.dynamic_rotate %0 by %c511_i32 dim 1 : vector<4x512xf32>, i32 -> vector<4x512xf32>
    %c5 = arith.constant 5 : index
    %c0_50 = arith.constant 0 : index
    %167 = vector.load %arg1[%c5, %c0_50] : memref<9x512xf32, #tpu.memory_space<vmem>>, vector<1x512xf32>
    %168 = vector.shape_cast %167 : vector<1x512xf32> to vector<512xf32>
    %169 = vector.shape_cast %168 : vector<512xf32> to vector<1x512xf32>
    %170 = vector.broadcast %169 : vector<1x512xf32> to vector<4x512xf32>
    %171 = arith.mulf %166, %170 : vector<4x512xf32>
    %c5_51 = arith.constant 5 : index
    %c0_52 = arith.constant 0 : index
    %c0_53 = arith.constant 0 : index
    %172 = vector.load %arg2[%c5_51, %c0_52, %c0_53] : memref<36x6x1xf32, #tpu.memory_space<vmem>>, vector<1x6x1xf32>
    %173 = vector.shape_cast %172 : vector<1x6x1xf32> to vector<6x1xf32>
    %174 = vector.extract_strided_slice %171 {offsets = [0, 0], sizes = [1, 512], strides = [1, 1]} : vector<4x512xf32> to vector<1x512xf32>
    %175 = vector.broadcast %173 : vector<6x1xf32> to vector<6x512xf32>
    %176 = vector.broadcast %174 : vector<1x512xf32> to vector<6x512xf32>
    %177 = arith.mulf %175, %176 : vector<6x512xf32>
    %178 = arith.addf %165, %177 : vector<6x512xf32>
    %c14 = arith.constant 14 : index
    %c0_54 = arith.constant 0 : index
    %c0_55 = arith.constant 0 : index
    %179 = vector.load %arg2[%c14, %c0_54, %c0_55] : memref<36x6x1xf32, #tpu.memory_space<vmem>>, vector<1x6x1xf32>
    %180 = vector.shape_cast %179 : vector<1x6x1xf32> to vector<6x1xf32>
    %181 = vector.extract_strided_slice %171 {offsets = [1, 0], sizes = [1, 512], strides = [1, 1]} : vector<4x512xf32> to vector<1x512xf32>
    %182 = vector.broadcast %180 : vector<6x1xf32> to vector<6x512xf32>
    %183 = vector.broadcast %181 : vector<1x512xf32> to vector<6x512xf32>
    %184 = arith.mulf %182, %183 : vector<6x512xf32>
    %185 = arith.addf %178, %184 : vector<6x512xf32>
    %c23 = arith.constant 23 : index
    %c0_56 = arith.constant 0 : index
    %c0_57 = arith.constant 0 : index
    %186 = vector.load %arg2[%c23, %c0_56, %c0_57] : memref<36x6x1xf32, #tpu.memory_space<vmem>>, vector<1x6x1xf32>
    %187 = vector.shape_cast %186 : vector<1x6x1xf32> to vector<6x1xf32>
    %188 = vector.extract_strided_slice %171 {offsets = [2, 0], sizes = [1, 512], strides = [1, 1]} : vector<4x512xf32> to vector<1x512xf32>
    %189 = vector.broadcast %187 : vector<6x1xf32> to vector<6x512xf32>
    %190 = vector.broadcast %188 : vector<1x512xf32> to vector<6x512xf32>
    %191 = arith.mulf %189, %190 : vector<6x512xf32>
    %192 = arith.addf %185, %191 : vector<6x512xf32>
    %c32 = arith.constant 32 : index
    %c0_58 = arith.constant 0 : index
    %c0_59 = arith.constant 0 : index
    %193 = vector.load %arg2[%c32, %c0_58, %c0_59] : memref<36x6x1xf32, #tpu.memory_space<vmem>>, vector<1x6x1xf32>
    %194 = vector.shape_cast %193 : vector<1x6x1xf32> to vector<6x1xf32>
    %195 = vector.extract_strided_slice %171 {offsets = [3, 0], sizes = [1, 512], strides = [1, 1]} : vector<4x512xf32> to vector<1x512xf32>
    %196 = vector.broadcast %194 : vector<6x1xf32> to vector<6x512xf32>
    %197 = vector.broadcast %195 : vector<1x512xf32> to vector<6x512xf32>
    %198 = arith.mulf %196, %197 : vector<6x512xf32>
    %199 = arith.addf %192, %198 : vector<6x512xf32>
    %c497_i32 = arith.constant 497 : i32
    %200 = tpu.dynamic_rotate %0 by %c497_i32 dim 1 : vector<4x512xf32>, i32 -> vector<4x512xf32>
    %c6 = arith.constant 6 : index
    %c0_60 = arith.constant 0 : index
    %201 = vector.load %arg1[%c6, %c0_60] : memref<9x512xf32, #tpu.memory_space<vmem>>, vector<1x512xf32>
    %202 = vector.shape_cast %201 : vector<1x512xf32> to vector<512xf32>
    %203 = vector.shape_cast %202 : vector<512xf32> to vector<1x512xf32>
    %204 = vector.broadcast %203 : vector<1x512xf32> to vector<4x512xf32>
    %205 = arith.mulf %200, %204 : vector<4x512xf32>
    %c6_61 = arith.constant 6 : index
    %c0_62 = arith.constant 0 : index
    %c0_63 = arith.constant 0 : index
    %206 = vector.load %arg2[%c6_61, %c0_62, %c0_63] : memref<36x6x1xf32, #tpu.memory_space<vmem>>, vector<1x6x1xf32>
    %207 = vector.shape_cast %206 : vector<1x6x1xf32> to vector<6x1xf32>
    %208 = vector.extract_strided_slice %205 {offsets = [0, 0], sizes = [1, 512], strides = [1, 1]} : vector<4x512xf32> to vector<1x512xf32>
    %209 = vector.broadcast %207 : vector<6x1xf32> to vector<6x512xf32>
    %210 = vector.broadcast %208 : vector<1x512xf32> to vector<6x512xf32>
    %211 = arith.mulf %209, %210 : vector<6x512xf32>
    %212 = arith.addf %199, %211 : vector<6x512xf32>
    %c15 = arith.constant 15 : index
    %c0_64 = arith.constant 0 : index
    %c0_65 = arith.constant 0 : index
    %213 = vector.load %arg2[%c15, %c0_64, %c0_65] : memref<36x6x1xf32, #tpu.memory_space<vmem>>, vector<1x6x1xf32>
    %214 = vector.shape_cast %213 : vector<1x6x1xf32> to vector<6x1xf32>
    %215 = vector.extract_strided_slice %205 {offsets = [1, 0], sizes = [1, 512], strides = [1, 1]} : vector<4x512xf32> to vector<1x512xf32>
    %216 = vector.broadcast %214 : vector<6x1xf32> to vector<6x512xf32>
    %217 = vector.broadcast %215 : vector<1x512xf32> to vector<6x512xf32>
    %218 = arith.mulf %216, %217 : vector<6x512xf32>
    %219 = arith.addf %212, %218 : vector<6x512xf32>
    %c24 = arith.constant 24 : index
    %c0_66 = arith.constant 0 : index
    %c0_67 = arith.constant 0 : index
    %220 = vector.load %arg2[%c24, %c0_66, %c0_67] : memref<36x6x1xf32, #tpu.memory_space<vmem>>, vector<1x6x1xf32>
    %221 = vector.shape_cast %220 : vector<1x6x1xf32> to vector<6x1xf32>
    %222 = vector.extract_strided_slice %205 {offsets = [2, 0], sizes = [1, 512], strides = [1, 1]} : vector<4x512xf32> to vector<1x512xf32>
    %223 = vector.broadcast %221 : vector<6x1xf32> to vector<6x512xf32>
    %224 = vector.broadcast %222 : vector<1x512xf32> to vector<6x512xf32>
    %225 = arith.mulf %223, %224 : vector<6x512xf32>
    %226 = arith.addf %219, %225 : vector<6x512xf32>
    %c33 = arith.constant 33 : index
    %c0_68 = arith.constant 0 : index
    %c0_69 = arith.constant 0 : index
    %227 = vector.load %arg2[%c33, %c0_68, %c0_69] : memref<36x6x1xf32, #tpu.memory_space<vmem>>, vector<1x6x1xf32>
    %228 = vector.shape_cast %227 : vector<1x6x1xf32> to vector<6x1xf32>
    %229 = vector.extract_strided_slice %205 {offsets = [3, 0], sizes = [1, 512], strides = [1, 1]} : vector<4x512xf32> to vector<1x512xf32>
    %230 = vector.broadcast %228 : vector<6x1xf32> to vector<6x512xf32>
    %231 = vector.broadcast %229 : vector<1x512xf32> to vector<6x512xf32>
    %232 = arith.mulf %230, %231 : vector<6x512xf32>
    %233 = arith.addf %226, %232 : vector<6x512xf32>
    %c496_i32 = arith.constant 496 : i32
    %234 = tpu.dynamic_rotate %0 by %c496_i32 dim 1 : vector<4x512xf32>, i32 -> vector<4x512xf32>
    %c7 = arith.constant 7 : index
    %c0_70 = arith.constant 0 : index
    %235 = vector.load %arg1[%c7, %c0_70] : memref<9x512xf32, #tpu.memory_space<vmem>>, vector<1x512xf32>
    %236 = vector.shape_cast %235 : vector<1x512xf32> to vector<512xf32>
    %237 = vector.shape_cast %236 : vector<512xf32> to vector<1x512xf32>
    %238 = vector.broadcast %237 : vector<1x512xf32> to vector<4x512xf32>
    %239 = arith.mulf %234, %238 : vector<4x512xf32>
    %c7_71 = arith.constant 7 : index
    %c0_72 = arith.constant 0 : index
    %c0_73 = arith.constant 0 : index
    %240 = vector.load %arg2[%c7_71, %c0_72, %c0_73] : memref<36x6x1xf32, #tpu.memory_space<vmem>>, vector<1x6x1xf32>
    %241 = vector.shape_cast %240 : vector<1x6x1xf32> to vector<6x1xf32>
    %242 = vector.extract_strided_slice %239 {offsets = [0, 0], sizes = [1, 512], strides = [1, 1]} : vector<4x512xf32> to vector<1x512xf32>
    %243 = vector.broadcast %241 : vector<6x1xf32> to vector<6x512xf32>
    %244 = vector.broadcast %242 : vector<1x512xf32> to vector<6x512xf32>
    %245 = arith.mulf %243, %244 : vector<6x512xf32>
    %246 = arith.addf %233, %245 : vector<6x512xf32>
    %c16 = arith.constant 16 : index
    %c0_74 = arith.constant 0 : index
    %c0_75 = arith.constant 0 : index
    %247 = vector.load %arg2[%c16, %c0_74, %c0_75] : memref<36x6x1xf32, #tpu.memory_space<vmem>>, vector<1x6x1xf32>
    %248 = vector.shape_cast %247 : vector<1x6x1xf32> to vector<6x1xf32>
    %249 = vector.extract_strided_slice %239 {offsets = [1, 0], sizes = [1, 512], strides = [1, 1]} : vector<4x512xf32> to vector<1x512xf32>
    %250 = vector.broadcast %248 : vector<6x1xf32> to vector<6x512xf32>
    %251 = vector.broadcast %249 : vector<1x512xf32> to vector<6x512xf32>
    %252 = arith.mulf %250, %251 : vector<6x512xf32>
    %253 = arith.addf %246, %252 : vector<6x512xf32>
    %c25 = arith.constant 25 : index
    %c0_76 = arith.constant 0 : index
    %c0_77 = arith.constant 0 : index
    %254 = vector.load %arg2[%c25, %c0_76, %c0_77] : memref<36x6x1xf32, #tpu.memory_space<vmem>>, vector<1x6x1xf32>
    %255 = vector.shape_cast %254 : vector<1x6x1xf32> to vector<6x1xf32>
    %256 = vector.extract_strided_slice %239 {offsets = [2, 0], sizes = [1, 512], strides = [1, 1]} : vector<4x512xf32> to vector<1x512xf32>
    %257 = vector.broadcast %255 : vector<6x1xf32> to vector<6x512xf32>
    %258 = vector.broadcast %256 : vector<1x512xf32> to vector<6x512xf32>
    %259 = arith.mulf %257, %258 : vector<6x512xf32>
    %260 = arith.addf %253, %259 : vector<6x512xf32>
    %c34 = arith.constant 34 : index
    %c0_78 = arith.constant 0 : index
    %c0_79 = arith.constant 0 : index
    %261 = vector.load %arg2[%c34, %c0_78, %c0_79] : memref<36x6x1xf32, #tpu.memory_space<vmem>>, vector<1x6x1xf32>
    %262 = vector.shape_cast %261 : vector<1x6x1xf32> to vector<6x1xf32>
    %263 = vector.extract_strided_slice %239 {offsets = [3, 0], sizes = [1, 512], strides = [1, 1]} : vector<4x512xf32> to vector<1x512xf32>
    %264 = vector.broadcast %262 : vector<6x1xf32> to vector<6x512xf32>
    %265 = vector.broadcast %263 : vector<1x512xf32> to vector<6x512xf32>
    %266 = arith.mulf %264, %265 : vector<6x512xf32>
    %267 = arith.addf %260, %266 : vector<6x512xf32>
    %c495_i32 = arith.constant 495 : i32
    %268 = tpu.dynamic_rotate %0 by %c495_i32 dim 1 : vector<4x512xf32>, i32 -> vector<4x512xf32>
    %c8 = arith.constant 8 : index
    %c0_80 = arith.constant 0 : index
    %269 = vector.load %arg1[%c8, %c0_80] : memref<9x512xf32, #tpu.memory_space<vmem>>, vector<1x512xf32>
    %270 = vector.shape_cast %269 : vector<1x512xf32> to vector<512xf32>
    %271 = vector.shape_cast %270 : vector<512xf32> to vector<1x512xf32>
    %272 = vector.broadcast %271 : vector<1x512xf32> to vector<4x512xf32>
    %273 = arith.mulf %268, %272 : vector<4x512xf32>
    %c8_81 = arith.constant 8 : index
    %c0_82 = arith.constant 0 : index
    %c0_83 = arith.constant 0 : index
    %274 = vector.load %arg2[%c8_81, %c0_82, %c0_83] : memref<36x6x1xf32, #tpu.memory_space<vmem>>, vector<1x6x1xf32>
    %275 = vector.shape_cast %274 : vector<1x6x1xf32> to vector<6x1xf32>
    %276 = vector.extract_strided_slice %273 {offsets = [0, 0], sizes = [1, 512], strides = [1, 1]} : vector<4x512xf32> to vector<1x512xf32>
    %277 = vector.broadcast %275 : vector<6x1xf32> to vector<6x512xf32>
    %278 = vector.broadcast %276 : vector<1x512xf32> to vector<6x512xf32>
    %279 = arith.mulf %277, %278 : vector<6x512xf32>
    %280 = arith.addf %267, %279 : vector<6x512xf32>
    %c17 = arith.constant 17 : index
    %c0_84 = arith.constant 0 : index
    %c0_85 = arith.constant 0 : index
    %281 = vector.load %arg2[%c17, %c0_84, %c0_85] : memref<36x6x1xf32, #tpu.memory_space<vmem>>, vector<1x6x1xf32>
    %282 = vector.shape_cast %281 : vector<1x6x1xf32> to vector<6x1xf32>
    %283 = vector.extract_strided_slice %273 {offsets = [1, 0], sizes = [1, 512], strides = [1, 1]} : vector<4x512xf32> to vector<1x512xf32>
    %284 = vector.broadcast %282 : vector<6x1xf32> to vector<6x512xf32>
    %285 = vector.broadcast %283 : vector<1x512xf32> to vector<6x512xf32>
    %286 = arith.mulf %284, %285 : vector<6x512xf32>
    %287 = arith.addf %280, %286 : vector<6x512xf32>
    %c26 = arith.constant 26 : index
    %c0_86 = arith.constant 0 : index
    %c0_87 = arith.constant 0 : index
    %288 = vector.load %arg2[%c26, %c0_86, %c0_87] : memref<36x6x1xf32, #tpu.memory_space<vmem>>, vector<1x6x1xf32>
    %289 = vector.shape_cast %288 : vector<1x6x1xf32> to vector<6x1xf32>
    %290 = vector.extract_strided_slice %273 {offsets = [2, 0], sizes = [1, 512], strides = [1, 1]} : vector<4x512xf32> to vector<1x512xf32>
    %291 = vector.broadcast %289 : vector<6x1xf32> to vector<6x512xf32>
    %292 = vector.broadcast %290 : vector<1x512xf32> to vector<6x512xf32>
    %293 = arith.mulf %291, %292 : vector<6x512xf32>
    %294 = arith.addf %287, %293 : vector<6x512xf32>
    %c35 = arith.constant 35 : index
    %c0_88 = arith.constant 0 : index
    %c0_89 = arith.constant 0 : index
    %295 = vector.load %arg2[%c35, %c0_88, %c0_89] : memref<36x6x1xf32, #tpu.memory_space<vmem>>, vector<1x6x1xf32>
    %296 = vector.shape_cast %295 : vector<1x6x1xf32> to vector<6x1xf32>
    %297 = vector.extract_strided_slice %273 {offsets = [3, 0], sizes = [1, 512], strides = [1, 1]} : vector<4x512xf32> to vector<1x512xf32>
    %298 = vector.broadcast %296 : vector<6x1xf32> to vector<6x512xf32>
    %299 = vector.broadcast %297 : vector<1x512xf32> to vector<6x512xf32>
    %300 = arith.mulf %298, %299 : vector<6x512xf32>
    %301 = arith.addf %294, %300 : vector<6x512xf32>
    %cst_90 = arith.constant dense<0.000000e+00> : vector<6xf32>
    %302 = vector.multi_reduction <add>, %301, %cst_90 [1] : vector<6x512xf32> to vector<6xf32>
    %303 = vector.shape_cast %302 : vector<6xf32> to vector<6x1xf32>
    %cst_91 = arith.constant 5.120000e+02 : f32
    %304 = vector.broadcast %cst_91 : f32 to vector<6x1xf32>
    %305 = arith.divf %303, %304 : vector<6x1xf32>
    %306 = arith.mulf %301, %301 : vector<6x512xf32>
    %cst_92 = arith.constant dense<0.000000e+00> : vector<6xf32>
    %307 = vector.multi_reduction <add>, %306, %cst_92 [1] : vector<6x512xf32> to vector<6xf32>
    %308 = vector.shape_cast %307 : vector<6xf32> to vector<6x1xf32>
    %cst_93 = arith.constant 5.120000e+02 : f32
    %309 = vector.broadcast %cst_93 : f32 to vector<6x1xf32>
    %310 = arith.divf %308, %309 : vector<6x1xf32>
    %311 = arith.mulf %305, %305 : vector<6x1xf32>
    %312 = arith.subf %310, %311 : vector<6x1xf32>
    %c0_94 = arith.constant 0 : index
    %c0_95 = arith.constant 0 : index
    %313 = vector.load %arg3[%c0_94, %c0_95] : memref<6x1xf32, #tpu.memory_space<vmem>>, vector<6x1xf32>
    %cst_96 = arith.constant 9.99999974E-6 : f32
    %314 = vector.broadcast %cst_96 : f32 to vector<6x1xf32>
    %315 = arith.addf %312, %314 : vector<6x1xf32>
    %316 = math.rsqrt %315 : vector<6x1xf32>
    %317 = arith.mulf %313, %316 : vector<6x1xf32>
    %c0_97 = arith.constant 0 : index
    %c0_98 = arith.constant 0 : index
    %318 = vector.load %arg4[%c0_97, %c0_98] : memref<6x1xf32, #tpu.memory_space<vmem>>, vector<6x1xf32>
    %319 = arith.mulf %305, %317 : vector<6x1xf32>
    %320 = arith.subf %318, %319 : vector<6x1xf32>
    %321 = vector.broadcast %317 : vector<6x1xf32> to vector<6x512xf32>
    %322 = arith.mulf %301, %321 : vector<6x512xf32>
    %323 = vector.broadcast %320 : vector<6x1xf32> to vector<6x512xf32>
    %324 = arith.addf %322, %323 : vector<6x512xf32>
    %cst_99 = arith.constant 0.000000e+00 : f32
    %325 = vector.broadcast %cst_99 : f32 to vector<6x512xf32>
    %326 = arith.maximumf %324, %325 : vector<6x512xf32>
    %c0_100 = arith.constant 0 : index
    %c0_101 = arith.constant 0 : index
    %327 = vector.load %arg5[%c0_100, %c0_101] : memref<6x512xf32, #tpu.memory_space<vmem>>, vector<6x512xf32>
    tpu.vector_store %arg5[%c0_100, %c0_101], %326 {strides = array<i32>} : memref<6x512xf32, #tpu.memory_space<vmem>>, vector<6x512xf32>,
    return
  }
}

</mosaic_0001>

<llo_original>
// kernel: preprocessing_module.1
$region0: #{preprocessing_module.1}
  #allocation0 [shape = 'u32[]', space=smem, size = 0x4, offset = 0x4, fixed_abs, tag = 'smem constant byte address 0x4 - core index']
  #allocation1 [shape = 'u32[144,128]{1,0:T(1,128)}', space=vmem, size = 0x12000, scoped, tag = 'internal scratch']
  %s0 = inlined_call_operand.vmem [shape: f32[4,512], index: 0, kind: input, shape index: {}]
  %s1 = inlined_call_operand.vmem [shape: f32[9,512], index: 1, kind: input, shape index: {}]
  %s2 = inlined_call_operand.vmem [shape: f32[36,6,1], index: 2, kind: input, shape index: {}]
  %s3 = inlined_call_operand.vmem [shape: f32[6,1], index: 3, kind: input, shape index: {}]
  %s4 = inlined_call_operand.vmem [shape: f32[6,1], index: 4, kind: input, shape index: {}]
  %s5 = inlined_call_operand.vmem [shape: f32[6,512], index: 5, kind: output, shape index: {}]
  %s6 = sld [smem:[#allocation0]]
  $region30: #{preprocessing_module.1} parent=0
    _
  %s8 = ssub.s32 1, %s6
  %s9 = scalar_select 0, %s8, %s6
  // Predicated region
  $region2: #{preprocessing_module.1} parent=0 // pred_check
    _
  $region3: #{preprocessing_module.1} parent=0 // pred_check_branch
    %11 = sbr.rel (0) target = $region5
  $region4: #{preprocessing_module.1} parent=0 // pred_region
    _
  $region5: #{preprocessing_module.1} parent=0 // pred_fallthru
    _
  // Predicated region
  $region6: #{preprocessing_module.1} parent=0 // pred_check
    _
  $region7: #{preprocessing_module.1} parent=0 // pred_check_branch
    %13 = sbr.rel (0) target = $region9
  $region8: #{preprocessing_module.1} parent=0 // pred_region
    _
  $region9: #{preprocessing_module.1} parent=0 // pred_fallthru
    _
  // Predicated region
  $region10: #{preprocessing_module.1} parent=0 // pred_check
    _
  $region11: #{preprocessing_module.1} parent=0 // pred_check_branch
    %15 = sbr.rel (0) target = $region13
  $region12: #{preprocessing_module.1} parent=0 // pred_region
    _
  $region13: #{preprocessing_module.1} parent=0 // pred_fallthru
    _
  // Predicated region
  $region14: #{preprocessing_module.1} parent=0 // pred_check
    _
  $region15: #{preprocessing_module.1} parent=0 // pred_check_branch
    %17 = sbr.rel (0) target = $region17
  $region16: #{preprocessing_module.1} parent=0 // pred_region
    _
  $region17: #{preprocessing_module.1} parent=0 // pred_fallthru
    _
  // Predicated region
  $region18: #{preprocessing_module.1} parent=0 // pred_check
    _
  $region19: #{preprocessing_module.1} parent=0 // pred_check_branch
    %19 = sbr.rel (0) target = $region21
  $region20: #{preprocessing_module.1} parent=0 // pred_region
    _
  $region21: #{preprocessing_module.1} parent=0 // pred_fallthru
    _
  %v20 = vld [vmem:[%s0] sm:$0xff]
  %v21 = vld [vmem:[%s0 + $0x8] sm:$0xff]
  %v24 = vcombine.high %v20, %v20
  %v25 = vcombine.high %v21, %v21
  %28 = vrot.lane.b32.xlu0 %v20, 17
  %v29 = vpop.permute.xlu0 %28
  %30 = vrot.lane.b32.xlu0 %v24, 17
  %v31 = vpop.permute.xlu0 %30
  %32 = vrot.lane.b32.xlu0 %v21, 17
  %v33 = vpop.permute.xlu0 %32
  %34 = vrot.lane.b32.xlu0 %v25, 17
  %v35 = vpop.permute.xlu0 %34
  %v36 = vlaneseq
  %v37 = vand.u32 %v36, 127
  %vm38 = vcmp.lt.s32.totalorder %v37, 17
  %v39 = vsel %vm38, %v33, %v35
  %v40 = vsel %vm38, %v31, %v33
  %v41 = vsel %vm38, %v29, %v31
  %v42 = vsel %vm38, %v35, %v29
  %v43 = vld [vmem:[%s1] ss:$8 sm:$0xf]
  %v45 = vlaneseq
  %v46 = vshrl.u32 %v45, 7
  %v47 = vsub.s32 0, %v46
  %v48 = vrot.slane %v43, %v47
  %v49 = vlaneseq
  %v50 = vshrl.u32 %v49, 7
  %v51 = vsub.s32 1, %v50
  %v52 = vrot.slane %v43, %v51
  %v53 = vlaneseq
  %v54 = vshrl.u32 %v53, 7
  %v55 = vsub.s32 2, %v54
  %v56 = vrot.slane %v43, %v55
  %v57 = vlaneseq
  %v58 = vshrl.u32 %v57, 7
  %v59 = vsub.s32 3, %v58
  %v60 = vrot.slane %v43, %v59
  %v65 = vmul.f32 %v42, %v48
  %v66 = vmul.f32 %v41, %v52
  %v67 = vmul.f32 %v40, %v56
  %v68 = vmul.f32 %v39, %v60
  %v69 = vld [vmem:[%s2] sm:$0x3f]
  %71 = vset.pattern.permute.xlu0 0
  %72 = vperm.xlu0 %71, %v69
  %v73 = vpop.permute.xlu0 %72
  %v75 = vlaneseq
  %v76 = vshrl.u32 %v75, 7
  %v77 = vsub.s32 0, %v76
  %v78 = vrot.slane %v65, %v77
  %v79 = vlaneseq
  %v80 = vshrl.u32 %v79, 7
  %v81 = vsub.s32 0, %v80
  %v82 = vrot.slane %v66, %v81
  %v83 = vlaneseq
  %v84 = vshrl.u32 %v83, 7
  %v85 = vsub.s32 0, %v84
  %v86 = vrot.slane %v67, %v85
  %v87 = vlaneseq
  %v88 = vshrl.u32 %v87, 7
  %v89 = vsub.s32 0, %v88
  %v90 = vrot.slane %v68, %v89
  %v91 = vmul.f32 %v73, %v78
  %v92 = vmul.f32 %v73, %v82
  %v93 = vmul.f32 %v73, %v86
  %v94 = vmul.f32 %v73, %v90
  %v95 = vadd.f32 %v91, 0.0
  %v96 = vadd.f32 %v92, 0.0
  %v97 = vadd.f32 %v93, 0.0
  %v98 = vadd.f32 %v94, 0.0
  %s99 = scalar_lea.vmem %s2, 72
  %v100 = vld [vmem:[%s99] sm:$0x3f]
  %102 = vset.pattern.permute.xlu0 0
  %103 = vperm.xlu0 %102, %v100
  %v104 = vpop.permute.xlu0 %103
  %v106 = vlaneseq
  %v107 = vshrl.u32 %v106, 7
  %v108 = vsub.s32 1, %v107
  %v109 = vrot.slane %v65, %v108
  %v110 = vlaneseq
  %v111 = vshrl.u32 %v110, 7
  %v112 = vsub.s32 1, %v111
  %v113 = vrot.slane %v66, %v112
  %v114 = vlaneseq
  %v115 = vshrl.u32 %v114, 7
  %v116 = vsub.s32 1, %v115
  %v117 = vrot.slane %v67, %v116
  %v118 = vlaneseq
  %v119 = vshrl.u32 %v118, 7
  %v120 = vsub.s32 1, %v119
  %v121 = vrot.slane %v68, %v120
  %v122 = vmul.f32 %v104, %v109
  %v123 = vmul.f32 %v104, %v113
  %v124 = vmul.f32 %v104, %v117
  %v125 = vmul.f32 %v104, %v121
  %v126 = vadd.f32 %v95, %v122
  %v127 = vadd.f32 %v96, %v123
  %v128 = vadd.f32 %v97, %v124
  %v129 = vadd.f32 %v98, %v125
  %s130 = scalar_lea.vmem %s2, 144
  %v131 = vld [vmem:[%s130] sm:$0x3f]
  %133 = vset.pattern.permute.xlu0 0
  %134 = vperm.xlu0 %133, %v131
  %v135 = vpop.permute.xlu0 %134
  %v137 = vlaneseq
  %v138 = vshrl.u32 %v137, 7
  %v139 = vsub.s32 2, %v138
  %v140 = vrot.slane %v65, %v139
  %v141 = vlaneseq
  %v142 = vshrl.u32 %v141, 7
  %v143 = vsub.s32 2, %v142
  %v144 = vrot.slane %v66, %v143
  %v145 = vlaneseq
  %v146 = vshrl.u32 %v145, 7
  %v147 = vsub.s32 2, %v146
  %v148 = vrot.slane %v67, %v147
  %v149 = vlaneseq
  %v150 = vshrl.u32 %v149, 7
  %v151 = vsub.s32 2, %v150
  %v152 = vrot.slane %v68, %v151
  %v153 = vmul.f32 %v135, %v140
  %v154 = vmul.f32 %v135, %v144
  %v155 = vmul.f32 %v135, %v148
  %v156 = vmul.f32 %v135, %v152
  %v157 = vadd.f32 %v126, %v153
  %v158 = vadd.f32 %v127, %v154
  %v159 = vadd.f32 %v128, %v155
  %v160 = vadd.f32 %v129, %v156
  %s161 = scalar_lea.vmem %s2, 216
  %v162 = vld [vmem:[%s161] sm:$0x3f]
  %164 = vset.pattern.permute.xlu0 0
  %165 = vperm.xlu0 %164, %v162
  %v166 = vpop.permute.xlu0 %165
  %v168 = vlaneseq
  %v169 = vshrl.u32 %v168, 7
  %v170 = vsub.s32 3, %v169
  %v171 = vrot.slane %v65, %v170
  %v172 = vlaneseq
  %v173 = vshrl.u32 %v172, 7
  %v174 = vsub.s32 3, %v173
  %v175 = vrot.slane %v66, %v174
  %v176 = vlaneseq
  %v177 = vshrl.u32 %v176, 7
  %v178 = vsub.s32 3, %v177
  %v179 = vrot.slane %v67, %v178
  %v180 = vlaneseq
  %v181 = vshrl.u32 %v180, 7
  %v182 = vsub.s32 3, %v181
  %v183 = vrot.slane %v68, %v182
  %v184 = vmul.f32 %v166, %v171
  %v185 = vmul.f32 %v166, %v175
  %v186 = vmul.f32 %v166, %v179
  %v187 = vmul.f32 %v166, %v183
  %v188 = vadd.f32 %v157, %v184
  %v189 = vadd.f32 %v158, %v185
  %v190 = vadd.f32 %v159, %v186
  %v191 = vadd.f32 %v160, %v187
  %192 = vrot.lane.b32.xlu0 %v20, 16
  %v193 = vpop.permute.xlu0 %192
  %194 = vrot.lane.b32.xlu0 %v24, 16
  %v195 = vpop.permute.xlu0 %194
  %196 = vrot.lane.b32.xlu0 %v21, 16
  %v197 = vpop.permute.xlu0 %196
  %198 = vrot.lane.b32.xlu0 %v25, 16
  %v199 = vpop.permute.xlu0 %198
  %vm200 = vcmp.lt.s32.totalorder %v37, 16
  %v201 = vsel %vm200, %v197, %v199
  %v202 = vsel %vm200, %v195, %v197
  %v203 = vsel %vm200, %v193, %v195
  %v204 = vsel %vm200, %v199, %v193
  %s205 = scalar_lea.vmem %s1, 1
  %v206 = vld [vmem:[%s205] ss:$8 sm:$0xf]
  %v208 = vlaneseq
  %v209 = vshrl.u32 %v208, 7
  %v210 = vsub.s32 0, %v209
  %v211 = vrot.slane %v206, %v210
  %v212 = vlaneseq
  %v213 = vshrl.u32 %v212, 7
  %v214 = vsub.s32 1, %v213
  %v215 = vrot.slane %v206, %v214
  %v216 = vlaneseq
  %v217 = vshrl.u32 %v216, 7
  %v218 = vsub.s32 2, %v217
  %v219 = vrot.slane %v206, %v218
  %v220 = vlaneseq
  %v221 = vshrl.u32 %v220, 7
  %v222 = vsub.s32 3, %v221
  %v223 = vrot.slane %v206, %v222
  %v228 = vmul.f32 %v204, %v211
  %v229 = vmul.f32 %v203, %v215
  %v230 = vmul.f32 %v202, %v219
  %v231 = vmul.f32 %v201, %v223
  %s232 = scalar_lea.vmem %s2, 8
  %v233 = vld [vmem:[%s232] sm:$0x3f]
  %235 = vset.pattern.permute.xlu0 0
  %236 = vperm.xlu0 %235, %v233
  %v237 = vpop.permute.xlu0 %236
  %v239 = vlaneseq
  %v240 = vshrl.u32 %v239, 7
  %v241 = vsub.s32 0, %v240
  %v242 = vrot.slane %v228, %v241
  %v243 = vlaneseq
  %v244 = vshrl.u32 %v243, 7
  %v245 = vsub.s32 0, %v244
  %v246 = vrot.slane %v229, %v245
  %v247 = vlaneseq
  %v248 = vshrl.u32 %v247, 7
  %v249 = vsub.s32 0, %v248
  %v250 = vrot.slane %v230, %v249
  %v251 = vlaneseq
  %v252 = vshrl.u32 %v251, 7
  %v253 = vsub.s32 0, %v252
  %v254 = vrot.slane %v231, %v253
  %v255 = vmul.f32 %v237, %v242
  %v256 = vmul.f32 %v237, %v246
  %v257 = vmul.f32 %v237, %v250
  %v258 = vmul.f32 %v237, %v254
  %v259 = vadd.f32 %v188, %v255
  %v260 = vadd.f32 %v189, %v256
  %v261 = vadd.f32 %v190, %v257
  %v262 = vadd.f32 %v191, %v258
  %s263 = scalar_lea.vmem %s2, 80
  %v264 = vld [vmem:[%s263] sm:$0x3f]
  %266 = vset.pattern.permute.xlu0 0
  %267 = vperm.xlu0 %266, %v264
  %v268 = vpop.permute.xlu0 %267
  %v270 = vlaneseq
  %v271 = vshrl.u32 %v270, 7
  %v272 = vsub.s32 1, %v271
  %v273 = vrot.slane %v228, %v272
  %v274 = vlaneseq
  %v275 = vshrl.u32 %v274, 7
  %v276 = vsub.s32 1, %v275
  %v277 = vrot.slane %v229, %v276
  %v278 = vlaneseq
  %v279 = vshrl.u32 %v278, 7
  %v280 = vsub.s32 1, %v279
  %v281 = vrot.slane %v230, %v280
  %v282 = vlaneseq
  %v283 = vshrl.u32 %v282, 7
  %v284 = vsub.s32 1, %v283
  %v285 = vrot.slane %v231, %v284
  %v286 = vmul.f32 %v268, %v273
  %v287 = vmul.f32 %v268, %v277
  %v288 = vmul.f32 %v268, %v281
  %v289 = vmul.f32 %v268, %v285
  %v290 = vadd.f32 %v259, %v286
  %v291 = vadd.f32 %v260, %v287
  %v292 = vadd.f32 %v261, %v288
  %v293 = vadd.f32 %v262, %v289
  %s294 = scalar_lea.vmem %s2, 152
  %v295 = vld [vmem:[%s294] sm:$0x3f]
  %297 = vset.pattern.permute.xlu0 0
  %298 = vperm.xlu0 %297, %v295
  %v299 = vpop.permute.xlu0 %298
  %v301 = vlaneseq
  %v302 = vshrl.u32 %v301, 7
  %v303 = vsub.s32 2, %v302
  %v304 = vrot.slane %v228, %v303
  %v305 = vlaneseq
  %v306 = vshrl.u32 %v305, 7
  %v307 = vsub.s32 2, %v306
  %v308 = vrot.slane %v229, %v307
  %v309 = vlaneseq
  %v310 = vshrl.u32 %v309, 7
  %v311 = vsub.s32 2, %v310
  %v312 = vrot.slane %v230, %v311
  %v313 = vlaneseq
  %v314 = vshrl.u32 %v313, 7
  %v315 = vsub.s32 2, %v314
  %v316 = vrot.slane %v231, %v315
  %v317 = vmul.f32 %v299, %v304
  %v318 = vmul.f32 %v299, %v308
  %v319 = vmul.f32 %v299, %v312
  %v320 = vmul.f32 %v299, %v316
  %v321 = vadd.f32 %v290, %v317
  %v322 = vadd.f32 %v291, %v318
  %v323 = vadd.f32 %v292, %v319
  %v324 = vadd.f32 %v293, %v320
  %s325 = scalar_lea.vmem %s2, 224
  %v326 = vld [vmem:[%s325] sm:$0x3f]
  %328 = vset.pattern.permute.xlu0 0
  %329 = vperm.xlu0 %328, %v326
  %v330 = vpop.permute.xlu0 %329
  %v332 = vlaneseq
  %v333 = vshrl.u32 %v332, 7
  %v334 = vsub.s32 3, %v333
  %v335 = vrot.slane %v228, %v334
  %v336 = vlaneseq
  %v337 = vshrl.u32 %v336, 7
  %v338 = vsub.s32 3, %v337
  %v339 = vrot.slane %v229, %v338
  %v340 = vlaneseq
  %v341 = vshrl.u32 %v340, 7
  %v342 = vsub.s32 3, %v341
  %v343 = vrot.slane %v230, %v342
  %v344 = vlaneseq
  %v345 = vshrl.u32 %v344, 7
  %v346 = vsub.s32 3, %v345
  %v347 = vrot.slane %v231, %v346
  %v348 = vmul.f32 %v330, %v335
  %v349 = vmul.f32 %v330, %v339
  %v350 = vmul.f32 %v330, %v343
  %v351 = vmul.f32 %v330, %v347
  %v352 = vadd.f32 %v321, %v348
  %v353 = vadd.f32 %v322, %v349
  %v354 = vadd.f32 %v323, %v350
  %v355 = vadd.f32 %v324, %v351
  %356 = vrot.lane.b32.xlu0 %v20, 15
  %v357 = vpop.permute.xlu0 %356
  %358 = vrot.lane.b32.xlu0 %v24, 15
  %v359 = vpop.permute.xlu0 %358
  %360 = vrot.lane.b32.xlu0 %v21, 15
  %v361 = vpop.permute.xlu0 %360
  %362 = vrot.lane.b32.xlu0 %v25, 15
  %v363 = vpop.permute.xlu0 %362
  %vm364 = vcmp.lt.s32.totalorder %v37, 15
  %v365 = vsel %vm364, %v361, %v363
  %v366 = vsel %vm364, %v359, %v361
  %v367 = vsel %vm364, %v357, %v359
  %v368 = vsel %vm364, %v363, %v357
  %s369 = scalar_lea.vmem %s1, 2
  %v370 = vld [vmem:[%s369] ss:$8 sm:$0xf]
  %v372 = vlaneseq
  %v373 = vshrl.u32 %v372, 7
  %v374 = vsub.s32 0, %v373
  %v375 = vrot.slane %v370, %v374
  %v376 = vlaneseq
  %v377 = vshrl.u32 %v376, 7
  %v378 = vsub.s32 1, %v377
  %v379 = vrot.slane %v370, %v378
  %v380 = vlaneseq
  %v381 = vshrl.u32 %v380, 7
  %v382 = vsub.s32 2, %v381
  %v383 = vrot.slane %v370, %v382
  %v384 = vlaneseq
  %v385 = vshrl.u32 %v384, 7
  %v386 = vsub.s32 3, %v385
  %v387 = vrot.slane %v370, %v386
  %v392 = vmul.f32 %v368, %v375
  %v393 = vmul.f32 %v367, %v379
  %v394 = vmul.f32 %v366, %v383
  %v395 = vmul.f32 %v365, %v387
  %s396 = scalar_lea.vmem %s2, 16
  %v397 = vld [vmem:[%s396] sm:$0x3f]
  %399 = vset.pattern.permute.xlu0 0
  %400 = vperm.xlu0 %399, %v397
  %v401 = vpop.permute.xlu0 %400
  %v403 = vlaneseq
  %v404 = vshrl.u32 %v403, 7
  %v405 = vsub.s32 0, %v404
  %v406 = vrot.slane %v392, %v405
  %v407 = vlaneseq
  %v408 = vshrl.u32 %v407, 7
  %v409 = vsub.s32 0, %v408
  %v410 = vrot.slane %v393, %v409
  %v411 = vlaneseq
  %v412 = vshrl.u32 %v411, 7
  %v413 = vsub.s32 0, %v412
  %v414 = vrot.slane %v394, %v413
  %v415 = vlaneseq
  %v416 = vshrl.u32 %v415, 7
  %v417 = vsub.s32 0, %v416
  %v418 = vrot.slane %v395, %v417
  %v419 = vmul.f32 %v401, %v406
  %v420 = vmul.f32 %v401, %v410
  %v421 = vmul.f32 %v401, %v414
  %v422 = vmul.f32 %v401, %v418
  %v423 = vadd.f32 %v352, %v419
  %v424 = vadd.f32 %v353, %v420
  %v425 = vadd.f32 %v354, %v421
  %v426 = vadd.f32 %v355, %v422
  %s427 = scalar_lea.vmem %s2, 88
  %v428 = vld [vmem:[%s427] sm:$0x3f]
  %430 = vset.pattern.permute.xlu0 0
  %431 = vperm.xlu0 %430, %v428
  %v432 = vpop.permute.xlu0 %431
  %v434 = vlaneseq
  %v435 = vshrl.u32 %v434, 7
  %v436 = vsub.s32 1, %v435
  %v437 = vrot.slane %v392, %v436
  %v438 = vlaneseq
  %v439 = vshrl.u32 %v438, 7
  %v440 = vsub.s32 1, %v439
  %v441 = vrot.slane %v393, %v440
  %v442 = vlaneseq
  %v443 = vshrl.u32 %v442, 7
  %v444 = vsub.s32 1, %v443
  %v445 = vrot.slane %v394, %v444
  %v446 = vlaneseq
  %v447 = vshrl.u32 %v446, 7
  %v448 = vsub.s32 1, %v447
  %v449 = vrot.slane %v395, %v448
  %v450 = vmul.f32 %v432, %v437
  %v451 = vmul.f32 %v432, %v441
  %v452 = vmul.f32 %v432, %v445
  %v453 = vmul.f32 %v432, %v449
  %v454 = vadd.f32 %v423, %v450
  %v455 = vadd.f32 %v424, %v451
  %v456 = vadd.f32 %v425, %v452
  %v457 = vadd.f32 %v426, %v453
  %s458 = scalar_lea.vmem %s2, 160
  %v459 = vld [vmem:[%s458] sm:$0x3f]
  %461 = vset.pattern.permute.xlu0 0
  %462 = vperm.xlu0 %461, %v459
  %v463 = vpop.permute.xlu0 %462
  %v465 = vlaneseq
  %v466 = vshrl.u32 %v465, 7
  %v467 = vsub.s32 2, %v466
  %v468 = vrot.slane %v392, %v467
  %v469 = vlaneseq
  %v470 = vshrl.u32 %v469, 7
  %v471 = vsub.s32 2, %v470
  %v472 = vrot.slane %v393, %v471
  %v473 = vlaneseq
  %v474 = vshrl.u32 %v473, 7
  %v475 = vsub.s32 2, %v474
  %v476 = vrot.slane %v394, %v475
  %v477 = vlaneseq
  %v478 = vshrl.u32 %v477, 7
  %v479 = vsub.s32 2, %v478
  %v480 = vrot.slane %v395, %v479
  %v481 = vmul.f32 %v463, %v468
  %v482 = vmul.f32 %v463, %v472
  %v483 = vmul.f32 %v463, %v476
  %v484 = vmul.f32 %v463, %v480
  %v485 = vadd.f32 %v454, %v481
  %v486 = vadd.f32 %v455, %v482
  %v487 = vadd.f32 %v456, %v483
  %v488 = vadd.f32 %v457, %v484
  %s489 = scalar_lea.vmem %s2, 232
  %v490 = vld [vmem:[%s489] sm:$0x3f]
  %492 = vset.pattern.permute.xlu0 0
  %493 = vperm.xlu0 %492, %v490
  %v494 = vpop.permute.xlu0 %493
  %v496 = vlaneseq
  %v497 = vshrl.u32 %v496, 7
  %v498 = vsub.s32 3, %v497
  %v499 = vrot.slane %v392, %v498
  %v500 = vlaneseq
  %v501 = vshrl.u32 %v500, 7
  %v502 = vsub.s32 3, %v501
  %v503 = vrot.slane %v393, %v502
  %v504 = vlaneseq
  %v505 = vshrl.u32 %v504, 7
  %v506 = vsub.s32 3, %v505
  %v507 = vrot.slane %v394, %v506
  %v508 = vlaneseq
  %v509 = vshrl.u32 %v508, 7
  %v510 = vsub.s32 3, %v509
  %v511 = vrot.slane %v395, %v510
  %v512 = vmul.f32 %v494, %v499
  %v513 = vmul.f32 %v494, %v503
  %v514 = vmul.f32 %v494, %v507
  %v515 = vmul.f32 %v494, %v511
  %v516 = vadd.f32 %v485, %v512
  %v517 = vadd.f32 %v486, %v513
  %v518 = vadd.f32 %v487, %v514
  %v519 = vadd.f32 %v488, %v515
  %520 = vrot.lane.b32.xlu0 %v20, 1
  %v521 = vpop.permute.xlu0 %520
  %522 = vrot.lane.b32.xlu0 %v24, 1
  %v523 = vpop.permute.xlu0 %522
  %524 = vrot.lane.b32.xlu0 %v21, 1
  %v525 = vpop.permute.xlu0 %524
  %526 = vrot.lane.b32.xlu0 %v25, 1
  %v527 = vpop.permute.xlu0 %526
  %vm528 = vcmp.lt.s32.totalorder %v37, 1
  %v529 = vsel %vm528, %v525, %v527
  %v530 = vsel %vm528, %v523, %v525
  %v531 = vsel %vm528, %v521, %v523
  %v532 = vsel %vm528, %v527, %v521
  %s533 = scalar_lea.vmem %s1, 3
  %v534 = vld [vmem:[%s533] ss:$8 sm:$0xf]
  %v536 = vlaneseq
  %v537 = vshrl.u32 %v536, 7
  %v538 = vsub.s32 0, %v537
  %v539 = vrot.slane %v534, %v538
  %v540 = vlaneseq
  %v541 = vshrl.u32 %v540, 7
  %v542 = vsub.s32 1, %v541
  %v543 = vrot.slane %v534, %v542
  %v544 = vlaneseq
  %v545 = vshrl.u32 %v544, 7
  %v546 = vsub.s32 2, %v545
  %v547 = vrot.slane %v534, %v546
  %v548 = vlaneseq
  %v549 = vshrl.u32 %v548, 7
  %v550 = vsub.s32 3, %v549
  %v551 = vrot.slane %v534, %v550
  %v556 = vmul.f32 %v532, %v539
  %v557 = vmul.f32 %v531, %v543
  %v558 = vmul.f32 %v530, %v547
  %v559 = vmul.f32 %v529, %v551
  %s560 = scalar_lea.vmem %s2, 24
  %v561 = vld [vmem:[%s560] sm:$0x3f]
  %563 = vset.pattern.permute.xlu0 0
  %564 = vperm.xlu0 %563, %v561
  %v565 = vpop.permute.xlu0 %564
  %v567 = vlaneseq
  %v568 = vshrl.u32 %v567, 7
  %v569 = vsub.s32 0, %v568
  %v570 = vrot.slane %v556, %v569
  %v571 = vlaneseq
  %v572 = vshrl.u32 %v571, 7
  %v573 = vsub.s32 0, %v572
  %v574 = vrot.slane %v557, %v573
  %v575 = vlaneseq
  %v576 = vshrl.u32 %v575, 7
  %v577 = vsub.s32 0, %v576
  %v578 = vrot.slane %v558, %v577
  %v579 = vlaneseq
  %v580 = vshrl.u32 %v579, 7
  %v581 = vsub.s32 0, %v580
  %v582 = vrot.slane %v559, %v581
  %v583 = vmul.f32 %v565, %v570
  %v584 = vmul.f32 %v565, %v574
  %v585 = vmul.f32 %v565, %v578
  %v586 = vmul.f32 %v565, %v582
  %v587 = vadd.f32 %v516, %v583
  %v588 = vadd.f32 %v517, %v584
  %v589 = vadd.f32 %v518, %v585
  %v590 = vadd.f32 %v519, %v586
  %s591 = scalar_lea.vmem %s2, 96
  %v592 = vld [vmem:[%s591] sm:$0x3f]
  %594 = vset.pattern.permute.xlu0 0
  %595 = vperm.xlu0 %594, %v592
  %v596 = vpop.permute.xlu0 %595
  %v598 = vlaneseq
  %v599 = vshrl.u32 %v598, 7
  %v600 = vsub.s32 1, %v599
  %v601 = vrot.slane %v556, %v600
  %v602 = vlaneseq
  %v603 = vshrl.u32 %v602, 7
  %v604 = vsub.s32 1, %v603
  %v605 = vrot.slane %v557, %v604
  %v606 = vlaneseq
  %v607 = vshrl.u32 %v606, 7
  %v608 = vsub.s32 1, %v607
  %v609 = vrot.slane %v558, %v608
  %v610 = vlaneseq
  %v611 = vshrl.u32 %v610, 7
  %v612 = vsub.s32 1, %v611
  %v613 = vrot.slane %v559, %v612
  %v614 = vmul.f32 %v596, %v601
  %v615 = vmul.f32 %v596, %v605
  %v616 = vmul.f32 %v596, %v609
  %v617 = vmul.f32 %v596, %v613
  %v618 = vadd.f32 %v587, %v614
  %v619 = vadd.f32 %v588, %v615
  %v620 = vadd.f32 %v589, %v616
  %v621 = vadd.f32 %v590, %v617
  %s622 = scalar_lea.vmem %s2, 168
  %v623 = vld [vmem:[%s622] sm:$0x3f]
  %625 = vset.pattern.permute.xlu0 0
  %626 = vperm.xlu0 %625, %v623
  %v627 = vpop.permute.xlu0 %626
  %v629 = vlaneseq
  %v630 = vshrl.u32 %v629, 7
  %v631 = vsub.s32 2, %v630
  %v632 = vrot.slane %v556, %v631
  %v633 = vlaneseq
  %v634 = vshrl.u32 %v633, 7
  %v635 = vsub.s32 2, %v634
  %v636 = vrot.slane %v557, %v635
  %v637 = vlaneseq
  %v638 = vshrl.u32 %v637, 7
  %v639 = vsub.s32 2, %v638
  %v640 = vrot.slane %v558, %v639
  %v641 = vlaneseq
  %v642 = vshrl.u32 %v641, 7
  %v643 = vsub.s32 2, %v642
  %v644 = vrot.slane %v559, %v643
  %v645 = vmul.f32 %v627, %v632
  %v646 = vmul.f32 %v627, %v636
  %v647 = vmul.f32 %v627, %v640
  %v648 = vmul.f32 %v627, %v644
  %v649 = vadd.f32 %v618, %v645
  %v650 = vadd.f32 %v619, %v646
  %v651 = vadd.f32 %v620, %v647
  %v652 = vadd.f32 %v621, %v648
  %s653 = scalar_lea.vmem %s2, 240
  %v654 = vld [vmem:[%s653] sm:$0x3f]
  %656 = vset.pattern.permute.xlu0 0
  %657 = vperm.xlu0 %656, %v654
  %v658 = vpop.permute.xlu0 %657
  %v660 = vlaneseq
  %v661 = vshrl.u32 %v660, 7
  %v662 = vsub.s32 3, %v661
  %v663 = vrot.slane %v556, %v662
  %v664 = vlaneseq
  %v665 = vshrl.u32 %v664, 7
  %v666 = vsub.s32 3, %v665
  %v667 = vrot.slane %v557, %v666
  %v668 = vlaneseq
  %v669 = vshrl.u32 %v668, 7
  %v670 = vsub.s32 3, %v669
  %v671 = vrot.slane %v558, %v670
  %v672 = vlaneseq
  %v673 = vshrl.u32 %v672, 7
  %v674 = vsub.s32 3, %v673
  %v675 = vrot.slane %v559, %v674
  %v676 = vmul.f32 %v658, %v663
  %v677 = vmul.f32 %v658, %v667
  %v678 = vmul.f32 %v658, %v671
  %v679 = vmul.f32 %v658, %v675
  %v680 = vadd.f32 %v649, %v676
  %v681 = vadd.f32 %v650, %v677
  %v682 = vadd.f32 %v651, %v678
  %v683 = vadd.f32 %v652, %v679
  %s684 = scalar_lea.vmem %s2, 32
  %v685 = vld [vmem:[%s684] sm:$0x3f]
  %687 = vset.pattern.permute.xlu0 0
  %688 = vperm.xlu0 %687, %v685
  %v689 = vpop.permute.xlu0 %688
  %v691 = vlaneseq
  %v692 = vshrl.u32 %v691, 7
  %v693 = vsub.s32 0, %v692
  %v694 = vrot.slane %v20, %v693
  %v695 = vlaneseq
  %v696 = vshrl.u32 %v695, 7
  %v697 = vsub.s32 4, %v696
  %v698 = vrot.slane %v20, %v697
  %v699 = vlaneseq
  %v700 = vshrl.u32 %v699, 7
  %v701 = vsub.s32 0, %v700
  %v702 = vrot.slane %v21, %v701
  %v703 = vlaneseq
  %v704 = vshrl.u32 %v703, 7
  %v705 = vsub.s32 4, %v704
  %v706 = vrot.slane %v21, %v705
  %v711 = vlaneseq
  %v712 = vshrl.u32 %v711, 7
  %v713 = vsub.s32 0, %v712
  %v714 = vrot.slane %v694, %v713
  %v715 = vlaneseq
  %v716 = vshrl.u32 %v715, 7
  %v717 = vsub.s32 0, %v716
  %v718 = vrot.slane %v698, %v717
  %v719 = vlaneseq
  %v720 = vshrl.u32 %v719, 7
  %v721 = vsub.s32 0, %v720
  %v722 = vrot.slane %v702, %v721
  %v723 = vlaneseq
  %v724 = vshrl.u32 %v723, 7
  %v725 = vsub.s32 0, %v724
  %v726 = vrot.slane %v706, %v725
  %v727 = vmul.f32 %v689, %v714
  %v728 = vmul.f32 %v689, %v718
  %v729 = vmul.f32 %v689, %v722
  %v730 = vmul.f32 %v689, %v726
  %v731 = vadd.f32 %v680, %v727
  %v732 = vadd.f32 %v681, %v728
  %v733 = vadd.f32 %v682, %v729
  %v734 = vadd.f32 %v683, %v730
  %s735 = scalar_lea.vmem %s2, 104
  %v736 = vld [vmem:[%s735] sm:$0x3f]
  %738 = vset.pattern.permute.xlu0 0
  %739 = vperm.xlu0 %738, %v736
  %v740 = vpop.permute.xlu0 %739
  %v742 = vlaneseq
  %v743 = vshrl.u32 %v742, 7
  %v744 = vsub.s32 1, %v743
  %v745 = vrot.slane %v20, %v744
  %v746 = vlaneseq
  %v747 = vshrl.u32 %v746, 7
  %v748 = vsub.s32 5, %v747
  %v749 = vrot.slane %v20, %v748
  %v750 = vlaneseq
  %v751 = vshrl.u32 %v750, 7
  %v752 = vsub.s32 1, %v751
  %v753 = vrot.slane %v21, %v752
  %v754 = vlaneseq
  %v755 = vshrl.u32 %v754, 7
  %v756 = vsub.s32 5, %v755
  %v757 = vrot.slane %v21, %v756
  %v762 = vlaneseq
  %v763 = vshrl.u32 %v762, 7
  %v764 = vsub.s32 1, %v763
  %v765 = vrot.slane %v745, %v764
  %v766 = vlaneseq
  %v767 = vshrl.u32 %v766, 7
  %v768 = vsub.s32 1, %v767
  %v769 = vrot.slane %v749, %v768
  %v770 = vlaneseq
  %v771 = vshrl.u32 %v770, 7
  %v772 = vsub.s32 1, %v771
  %v773 = vrot.slane %v753, %v772
  %v774 = vlaneseq
  %v775 = vshrl.u32 %v774, 7
  %v776 = vsub.s32 1, %v775
  %v777 = vrot.slane %v757, %v776
  %v778 = vmul.f32 %v740, %v765
  %v779 = vmul.f32 %v740, %v769
  %v780 = vmul.f32 %v740, %v773
  %v781 = vmul.f32 %v740, %v777
  %v782 = vadd.f32 %v731, %v778
  %v783 = vadd.f32 %v732, %v779
  %v784 = vadd.f32 %v733, %v780
  %v785 = vadd.f32 %v734, %v781
  %s786 = scalar_lea.vmem %s2, 176
  %v787 = vld [vmem:[%s786] sm:$0x3f]
  %789 = vset.pattern.permute.xlu0 0
  %790 = vperm.xlu0 %789, %v787
  %v791 = vpop.permute.xlu0 %790
  %v793 = vlaneseq
  %v794 = vshrl.u32 %v793, 7
  %v795 = vsub.s32 2, %v794
  %v796 = vrot.slane %v20, %v795
  %v797 = vlaneseq
  %v798 = vshrl.u32 %v797, 7
  %v799 = vsub.s32 6, %v798
  %v800 = vrot.slane %v20, %v799
  %v801 = vlaneseq
  %v802 = vshrl.u32 %v801, 7
  %v803 = vsub.s32 2, %v802
  %v804 = vrot.slane %v21, %v803
  %v805 = vlaneseq
  %v806 = vshrl.u32 %v805, 7
  %v807 = vsub.s32 6, %v806
  %v808 = vrot.slane %v21, %v807
  %v813 = vlaneseq
  %v814 = vshrl.u32 %v813, 7
  %v815 = vsub.s32 2, %v814
  %v816 = vrot.slane %v796, %v815
  %v817 = vlaneseq
  %v818 = vshrl.u32 %v817, 7
  %v819 = vsub.s32 2, %v818
  %v820 = vrot.slane %v800, %v819
  %v821 = vlaneseq
  %v822 = vshrl.u32 %v821, 7
  %v823 = vsub.s32 2, %v822
  %v824 = vrot.slane %v804, %v823
  %v825 = vlaneseq
  %v826 = vshrl.u32 %v825, 7
  %v827 = vsub.s32 2, %v826
  %v828 = vrot.slane %v808, %v827
  %v829 = vmul.f32 %v791, %v816
  %v830 = vmul.f32 %v791, %v820
  %v831 = vmul.f32 %v791, %v824
  %v832 = vmul.f32 %v791, %v828
  %v833 = vadd.f32 %v782, %v829
  %v834 = vadd.f32 %v783, %v830
  %v835 = vadd.f32 %v784, %v831
  %v836 = vadd.f32 %v785, %v832
  %s837 = scalar_lea.vmem %s2, 248
  %v838 = vld [vmem:[%s837] sm:$0x3f]
  %840 = vset.pattern.permute.xlu0 0
  %841 = vperm.xlu0 %840, %v838
  %v842 = vpop.permute.xlu0 %841
  %v844 = vlaneseq
  %v845 = vshrl.u32 %v844, 7
  %v846 = vsub.s32 3, %v845
  %v847 = vrot.slane %v20, %v846
  %v848 = vlaneseq
  %v849 = vshrl.u32 %v848, 7
  %v850 = vsub.s32 7, %v849
  %v851 = vrot.slane %v20, %v850
  %v852 = vlaneseq
  %v853 = vshrl.u32 %v852, 7
  %v854 = vsub.s32 3, %v853
  %v855 = vrot.slane %v21, %v854
  %v856 = vlaneseq
  %v857 = vshrl.u32 %v856, 7
  %v858 = vsub.s32 7, %v857
  %v859 = vrot.slane %v21, %v858
  %v864 = vlaneseq
  %v865 = vshrl.u32 %v864, 7
  %v866 = vsub.s32 3, %v865
  %v867 = vrot.slane %v847, %v866
  %v868 = vlaneseq
  %v869 = vshrl.u32 %v868, 7
  %v870 = vsub.s32 3, %v869
  %v871 = vrot.slane %v851, %v870
  %v872 = vlaneseq
  %v873 = vshrl.u32 %v872, 7
  %v874 = vsub.s32 3, %v873
  %v875 = vrot.slane %v855, %v874
  %v876 = vlaneseq
  %v877 = vshrl.u32 %v876, 7
  %v878 = vsub.s32 3, %v877
  %v879 = vrot.slane %v859, %v878
  %v880 = vmul.f32 %v842, %v867
  %v881 = vmul.f32 %v842, %v871
  %v882 = vmul.f32 %v842, %v875
  %v883 = vmul.f32 %v842, %v879
  %v884 = vadd.f32 %v833, %v880
  %v885 = vadd.f32 %v834, %v881
  %v886 = vadd.f32 %v835, %v882
  %v887 = vadd.f32 %v836, %v883
  %888 = vrot.lane.b32.xlu0 %v20, 127
  %v889 = vpop.permute.xlu0 %888
  %890 = vrot.lane.b32.xlu0 %v24, 127
  %v891 = vpop.permute.xlu0 %890
  %892 = vrot.lane.b32.xlu0 %v21, 127
  %v893 = vpop.permute.xlu0 %892
  %894 = vrot.lane.b32.xlu0 %v25, 127
  %v895 = vpop.permute.xlu0 %894
  %vm896 = vcmp.lt.s32.totalorder %v37, 127
  %v897 = vsel %vm896, %v893, %v895
  %v898 = vsel %vm896, %v891, %v893
  %v899 = vsel %vm896, %v889, %v891
  %v900 = vsel %vm896, %v895, %v889
  %s901 = scalar_lea.vmem %s1, 5
  %v902 = vld [vmem:[%s901] ss:$8 sm:$0xf]
  %v904 = vlaneseq
  %v905 = vshrl.u32 %v904, 7
  %v906 = vsub.s32 0, %v905
  %v907 = vrot.slane %v902, %v906
  %v908 = vlaneseq
  %v909 = vshrl.u32 %v908, 7
  %v910 = vsub.s32 1, %v909
  %v911 = vrot.slane %v902, %v910
  %v912 = vlaneseq
  %v913 = vshrl.u32 %v912, 7
  %v914 = vsub.s32 2, %v913
  %v915 = vrot.slane %v902, %v914
  %v916 = vlaneseq
  %v917 = vshrl.u32 %v916, 7
  %v918 = vsub.s32 3, %v917
  %v919 = vrot.slane %v902, %v918
  %v924 = vmul.f32 %v899, %v907
  %v925 = vmul.f32 %v898, %v911
  %v926 = vmul.f32 %v897, %v915
  %v927 = vmul.f32 %v900, %v919
  %s928 = scalar_lea.vmem %s2, 40
  %v929 = vld [vmem:[%s928] sm:$0x3f]
  %931 = vset.pattern.permute.xlu0 0
  %932 = vperm.xlu0 %931, %v929
  %v933 = vpop.permute.xlu0 %932
  %v935 = vlaneseq
  %v936 = vshrl.u32 %v935, 7
  %v937 = vsub.s32 0, %v936
  %v938 = vrot.slane %v924, %v937
  %v939 = vlaneseq
  %v940 = vshrl.u32 %v939, 7
  %v941 = vsub.s32 0, %v940
  %v942 = vrot.slane %v925, %v941
  %v943 = vlaneseq
  %v944 = vshrl.u32 %v943, 7
  %v945 = vsub.s32 0, %v944
  %v946 = vrot.slane %v926, %v945
  %v947 = vlaneseq
  %v948 = vshrl.u32 %v947, 7
  %v949 = vsub.s32 0, %v948
  %v950 = vrot.slane %v927, %v949
  %v951 = vmul.f32 %v933, %v938
  %v952 = vmul.f32 %v933, %v942
  %v953 = vmul.f32 %v933, %v946
  %v954 = vmul.f32 %v933, %v950
  %v955 = vadd.f32 %v884, %v951
  %v956 = vadd.f32 %v885, %v952
  %v957 = vadd.f32 %v886, %v953
  %v958 = vadd.f32 %v887, %v954
  %s959 = scalar_lea.vmem %s2, 112
  %v960 = vld [vmem:[%s959] sm:$0x3f]
  %962 = vset.pattern.permute.xlu0 0
  %963 = vperm.xlu0 %962, %v960
  %v964 = vpop.permute.xlu0 %963
  %v966 = vlaneseq
  %v967 = vshrl.u32 %v966, 7
  %v968 = vsub.s32 1, %v967
  %v969 = vrot.slane %v924, %v968
  %v970 = vlaneseq
  %v971 = vshrl.u32 %v970, 7
  %v972 = vsub.s32 1, %v971
  %v973 = vrot.slane %v925, %v972
  %v974 = vlaneseq
  %v975 = vshrl.u32 %v974, 7
  %v976 = vsub.s32 1, %v975
  %v977 = vrot.slane %v926, %v976
  %v978 = vlaneseq
  %v979 = vshrl.u32 %v978, 7
  %v980 = vsub.s32 1, %v979
  %v981 = vrot.slane %v927, %v980
  %v982 = vmul.f32 %v964, %v969
  %v983 = vmul.f32 %v964, %v973
  %v984 = vmul.f32 %v964, %v977
  %v985 = vmul.f32 %v964, %v981
  %v986 = vadd.f32 %v955, %v982
  %v987 = vadd.f32 %v956, %v983
  %v988 = vadd.f32 %v957, %v984
  %v989 = vadd.f32 %v958, %v985
  %s990 = scalar_lea.vmem %s2, 184
  %v991 = vld [vmem:[%s990] sm:$0x3f]
  %993 = vset.pattern.permute.xlu0 0
  %994 = vperm.xlu0 %993, %v991
  %v995 = vpop.permute.xlu0 %994
  %v997 = vlaneseq
  %v998 = vshrl.u32 %v997, 7
  %v999 = vsub.s32 2, %v998
  %v1000 = vrot.slane %v924, %v999
  %v1001 = vlaneseq
  %v1002 = vshrl.u32 %v1001, 7
  %v1003 = vsub.s32 2, %v1002
  %v1004 = vrot.slane %v925, %v1003
  %v1005 = vlaneseq
  %v1006 = vshrl.u32 %v1005, 7
  %v1007 = vsub.s32 2, %v1006
  %v1008 = vrot.slane %v926, %v1007
  %v1009 = vlaneseq
  %v1010 = vshrl.u32 %v1009, 7
  %v1011 = vsub.s32 2, %v1010
  %v1012 = vrot.slane %v927, %v1011
  %v1013 = vmul.f32 %v995, %v1000
  %v1014 = vmul.f32 %v995, %v1004
  %v1015 = vmul.f32 %v995, %v1008
  %v1016 = vmul.f32 %v995, %v1012
  %v1017 = vadd.f32 %v986, %v1013
  %v1018 = vadd.f32 %v987, %v1014
  %v1019 = vadd.f32 %v988, %v1015
  %v1020 = vadd.f32 %v989, %v1016
  %s1021 = scalar_lea.vmem %s2, 256
  %v1022 = vld [vmem:[%s1021] sm:$0x3f]
  %1024 = vset.pattern.permute.xlu0 0
  %1025 = vperm.xlu0 %1024, %v1022
  %v1026 = vpop.permute.xlu0 %1025
  %v1028 = vlaneseq
  %v1029 = vshrl.u32 %v1028, 7
  %v1030 = vsub.s32 3, %v1029
  %v1031 = vrot.slane %v924, %v1030
  %v1032 = vlaneseq
  %v1033 = vshrl.u32 %v1032, 7
  %v1034 = vsub.s32 3, %v1033
  %v1035 = vrot.slane %v925, %v1034
  %v1036 = vlaneseq
  %v1037 = vshrl.u32 %v1036, 7
  %v1038 = vsub.s32 3, %v1037
  %v1039 = vrot.slane %v926, %v1038
  %v1040 = vlaneseq
  %v1041 = vshrl.u32 %v1040, 7
  %v1042 = vsub.s32 3, %v1041
  %v1043 = vrot.slane %v927, %v1042
  %v1044 = vmul.f32 %v1026, %v1031
  %v1045 = vmul.f32 %v1026, %v1035
  %v1046 = vmul.f32 %v1026, %v1039
  %v1047 = vmul.f32 %v1026, %v1043
  %v1048 = vadd.f32 %v1017, %v1044
  %v1049 = vadd.f32 %v1018, %v1045
  %v1050 = vadd.f32 %v1019, %v1046
  %v1051 = vadd.f32 %v1020, %v1047
  %1052 = vrot.lane.b32.xlu0 %v20, 113
  %v1053 = vpop.permute.xlu0 %1052
  %1054 = vrot.lane.b32.xlu0 %v24, 113
  %v1055 = vpop.permute.xlu0 %1054
  %1056 = vrot.lane.b32.xlu0 %v21, 113
  %v1057 = vpop.permute.xlu0 %1056
  %1058 = vrot.lane.b32.xlu0 %v25, 113
  %v1059 = vpop.permute.xlu0 %1058
  %vm1060 = vcmp.lt.s32.totalorder %v37, 113
  %v1061 = vsel %vm1060, %v1057, %v1059
  %v1062 = vsel %vm1060, %v1055, %v1057
  %v1063 = vsel %vm1060, %v1053, %v1055
  %v1064 = vsel %vm1060, %v1059, %v1053
  %s1065 = scalar_lea.vmem %s1, 6
  %v1066 = vld [vmem:[%s1065] ss:$8 sm:$0xf]
  %v1068 = vlaneseq
  %v1069 = vshrl.u32 %v1068, 7
  %v1070 = vsub.s32 0, %v1069
  %v1071 = vrot.slane %v1066, %v1070
  %v1072 = vlaneseq
  %v1073 = vshrl.u32 %v1072, 7
  %v1074 = vsub.s32 1, %v1073
  %v1075 = vrot.slane %v1066, %v1074
  %v1076 = vlaneseq
  %v1077 = vshrl.u32 %v1076, 7
  %v1078 = vsub.s32 2, %v1077
  %v1079 = vrot.slane %v1066, %v1078
  %v1080 = vlaneseq
  %v1081 = vshrl.u32 %v1080, 7
  %v1082 = vsub.s32 3, %v1081
  %v1083 = vrot.slane %v1066, %v1082
  %v1088 = vmul.f32 %v1063, %v1071
  %v1089 = vmul.f32 %v1062, %v1075
  %v1090 = vmul.f32 %v1061, %v1079
  %v1091 = vmul.f32 %v1064, %v1083
  %s1092 = scalar_lea.vmem %s2, 48
  %v1093 = vld [vmem:[%s1092] sm:$0x3f]
  %1095 = vset.pattern.permute.xlu0 0
  %1096 = vperm.xlu0 %1095, %v1093
  %v1097 = vpop.permute.xlu0 %1096
  %v1099 = vlaneseq
  %v1100 = vshrl.u32 %v1099, 7
  %v1101 = vsub.s32 0, %v1100
  %v1102 = vrot.slane %v1088, %v1101
  %v1103 = vlaneseq
  %v1104 = vshrl.u32 %v1103, 7
  %v1105 = vsub.s32 0, %v1104
  %v1106 = vrot.slane %v1089, %v1105
  %v1107 = vlaneseq
  %v1108 = vshrl.u32 %v1107, 7
  %v1109 = vsub.s32 0, %v1108
  %v1110 = vrot.slane %v1090, %v1109
  %v1111 = vlaneseq
  %v1112 = vshrl.u32 %v1111, 7
  %v1113 = vsub.s32 0, %v1112
  %v1114 = vrot.slane %v1091, %v1113
  %v1115 = vmul.f32 %v1097, %v1102
  %v1116 = vmul.f32 %v1097, %v1106
  %v1117 = vmul.f32 %v1097, %v1110
  %v1118 = vmul.f32 %v1097, %v1114
  %v1119 = vadd.f32 %v1048, %v1115
  %v1120 = vadd.f32 %v1049, %v1116
  %v1121 = vadd.f32 %v1050, %v1117
  %v1122 = vadd.f32 %v1051, %v1118
  %s1123 = scalar_lea.vmem %s2, 120
  %v1124 = vld [vmem:[%s1123] sm:$0x3f]
  %1126 = vset.pattern.permute.xlu0 0
  %1127 = vperm.xlu0 %1126, %v1124
  %v1128 = vpop.permute.xlu0 %1127
  %v1130 = vlaneseq
  %v1131 = vshrl.u32 %v1130, 7
  %v1132 = vsub.s32 1, %v1131
  %v1133 = vrot.slane %v1088, %v1132
  %v1134 = vlaneseq
  %v1135 = vshrl.u32 %v1134, 7
  %v1136 = vsub.s32 1, %v1135
  %v1137 = vrot.slane %v1089, %v1136
  %v1138 = vlaneseq
  %v1139 = vshrl.u32 %v1138, 7
  %v1140 = vsub.s32 1, %v1139
  %v1141 = vrot.slane %v1090, %v1140
  %v1142 = vlaneseq
  %v1143 = vshrl.u32 %v1142, 7
  %v1144 = vsub.s32 1, %v1143
  %v1145 = vrot.slane %v1091, %v1144
  %v1146 = vmul.f32 %v1128, %v1133
  %v1147 = vmul.f32 %v1128, %v1137
  %v1148 = vmul.f32 %v1128, %v1141
  %v1149 = vmul.f32 %v1128, %v1145
  %v1150 = vadd.f32 %v1119, %v1146
  %v1151 = vadd.f32 %v1120, %v1147
  %v1152 = vadd.f32 %v1121, %v1148
  %v1153 = vadd.f32 %v1122, %v1149
  %s1154 = scalar_lea.vmem %s2, 192
  %v1155 = vld [vmem:[%s1154] sm:$0x3f]
  %1157 = vset.pattern.permute.xlu0 0
  %1158 = vperm.xlu0 %1157, %v1155
  %v1159 = vpop.permute.xlu0 %1158
  %v1161 = vlaneseq
  %v1162 = vshrl.u32 %v1161, 7
  %v1163 = vsub.s32 2, %v1162
  %v1164 = vrot.slane %v1088, %v1163
  %v1165 = vlaneseq
  %v1166 = vshrl.u32 %v1165, 7
  %v1167 = vsub.s32 2, %v1166
  %v1168 = vrot.slane %v1089, %v1167
  %v1169 = vlaneseq
  %v1170 = vshrl.u32 %v1169, 7
  %v1171 = vsub.s32 2, %v1170
  %v1172 = vrot.slane %v1090, %v1171
  %v1173 = vlaneseq
  %v1174 = vshrl.u32 %v1173, 7
  %v1175 = vsub.s32 2, %v1174
  %v1176 = vrot.slane %v1091, %v1175
  %v1177 = vmul.f32 %v1159, %v1164
  %v1178 = vmul.f32 %v1159, %v1168
  %v1179 = vmul.f32 %v1159, %v1172
  %v1180 = vmul.f32 %v1159, %v1176
  %v1181 = vadd.f32 %v1150, %v1177
  %v1182 = vadd.f32 %v1151, %v1178
  %v1183 = vadd.f32 %v1152, %v1179
  %v1184 = vadd.f32 %v1153, %v1180
  %s1185 = scalar_lea.vmem %s2, 264
  %v1186 = vld [vmem:[%s1185] sm:$0x3f]
  %1188 = vset.pattern.permute.xlu0 0
  %1189 = vperm.xlu0 %1188, %v1186
  %v1190 = vpop.permute.xlu0 %1189
  %v1192 = vlaneseq
  %v1193 = vshrl.u32 %v1192, 7
  %v1194 = vsub.s32 3, %v1193
  %v1195 = vrot.slane %v1088, %v1194
  %v1196 = vlaneseq
  %v1197 = vshrl.u32 %v1196, 7
  %v1198 = vsub.s32 3, %v1197
  %v1199 = vrot.slane %v1089, %v1198
  %v1200 = vlaneseq
  %v1201 = vshrl.u32 %v1200, 7
  %v1202 = vsub.s32 3, %v1201
  %v1203 = vrot.slane %v1090, %v1202
  %v1204 = vlaneseq
  %v1205 = vshrl.u32 %v1204, 7
  %v1206 = vsub.s32 3, %v1205
  %v1207 = vrot.slane %v1091, %v1206
  %v1208 = vmul.f32 %v1190, %v1195
  %v1209 = vmul.f32 %v1190, %v1199
  %v1210 = vmul.f32 %v1190, %v1203
  %v1211 = vmul.f32 %v1190, %v1207
  %v1212 = vadd.f32 %v1181, %v1208
  %v1213 = vadd.f32 %v1182, %v1209
  %v1214 = vadd.f32 %v1183, %v1210
  %v1215 = vadd.f32 %v1184, %v1211
  %1216 = vrot.lane.b32.xlu0 %v20, 112
  %v1217 = vpop.permute.xlu0 %1216
  %1218 = vrot.lane.b32.xlu0 %v24, 112
  %v1219 = vpop.permute.xlu0 %1218
  %1220 = vrot.lane.b32.xlu0 %v21, 112
  %v1221 = vpop.permute.xlu0 %1220
  %1222 = vrot.lane.b32.xlu0 %v25, 112
  %v1223 = vpop.permute.xlu0 %1222
  %vm1224 = vcmp.lt.s32.totalorder %v37, 112
  %v1225 = vsel %vm1224, %v1221, %v1223
  %v1226 = vsel %vm1224, %v1219, %v1221
  %v1227 = vsel %vm1224, %v1217, %v1219
  %v1228 = vsel %vm1224, %v1223, %v1217
  %s1229 = scalar_lea.vmem %s1, 7
  %v1230 = vld [vmem:[%s1229] ss:$8 sm:$0xf]
  %v1232 = vlaneseq
  %v1233 = vshrl.u32 %v1232, 7
  %v1234 = vsub.s32 0, %v1233
  %v1235 = vrot.slane %v1230, %v1234
  %v1236 = vlaneseq
  %v1237 = vshrl.u32 %v1236, 7
  %v1238 = vsub.s32 1, %v1237
  %v1239 = vrot.slane %v1230, %v1238
  %v1240 = vlaneseq
  %v1241 = vshrl.u32 %v1240, 7
  %v1242 = vsub.s32 2, %v1241
  %v1243 = vrot.slane %v1230, %v1242
  %v1244 = vlaneseq
  %v1245 = vshrl.u32 %v1244, 7
  %v1246 = vsub.s32 3, %v1245
  %v1247 = vrot.slane %v1230, %v1246
  %v1252 = vmul.f32 %v1227, %v1235
  %v1253 = vmul.f32 %v1226, %v1239
  %v1254 = vmul.f32 %v1225, %v1243
  %v1255 = vmul.f32 %v1228, %v1247
  %s1256 = scalar_lea.vmem %s2, 56
  %v1257 = vld [vmem:[%s1256] sm:$0x3f]
  %1259 = vset.pattern.permute.xlu0 0
  %1260 = vperm.xlu0 %1259, %v1257
  %v1261 = vpop.permute.xlu0 %1260
  %v1263 = vlaneseq
  %v1264 = vshrl.u32 %v1263, 7
  %v1265 = vsub.s32 0, %v1264
  %v1266 = vrot.slane %v1252, %v1265
  %v1267 = vlaneseq
  %v1268 = vshrl.u32 %v1267, 7
  %v1269 = vsub.s32 0, %v1268
  %v1270 = vrot.slane %v1253, %v1269
  %v1271 = vlaneseq
  %v1272 = vshrl.u32 %v1271, 7
  %v1273 = vsub.s32 0, %v1272
  %v1274 = vrot.slane %v1254, %v1273
  %v1275 = vlaneseq
  %v1276 = vshrl.u32 %v1275, 7
  %v1277 = vsub.s32 0, %v1276
  %v1278 = vrot.slane %v1255, %v1277
  %v1279 = vmul.f32 %v1261, %v1266
  %v1280 = vmul.f32 %v1261, %v1270
  %v1281 = vmul.f32 %v1261, %v1274
  %v1282 = vmul.f32 %v1261, %v1278
  %v1283 = vadd.f32 %v1212, %v1279
  %v1284 = vadd.f32 %v1213, %v1280
  %v1285 = vadd.f32 %v1214, %v1281
  %v1286 = vadd.f32 %v1215, %v1282
  %s1287 = scalar_lea.vmem %s2, 128
  %v1288 = vld [vmem:[%s1287] sm:$0x3f]
  %1290 = vset.pattern.permute.xlu0 0
  %1291 = vperm.xlu0 %1290, %v1288
  %v1292 = vpop.permute.xlu0 %1291
  %v1294 = vlaneseq
  %v1295 = vshrl.u32 %v1294, 7
  %v1296 = vsub.s32 1, %v1295
  %v1297 = vrot.slane %v1252, %v1296
  %v1298 = vlaneseq
  %v1299 = vshrl.u32 %v1298, 7
  %v1300 = vsub.s32 1, %v1299
  %v1301 = vrot.slane %v1253, %v1300
  %v1302 = vlaneseq
  %v1303 = vshrl.u32 %v1302, 7
  %v1304 = vsub.s32 1, %v1303
  %v1305 = vrot.slane %v1254, %v1304
  %v1306 = vlaneseq
  %v1307 = vshrl.u32 %v1306, 7
  %v1308 = vsub.s32 1, %v1307
  %v1309 = vrot.slane %v1255, %v1308
  %v1310 = vmul.f32 %v1292, %v1297
  %v1311 = vmul.f32 %v1292, %v1301
  %v1312 = vmul.f32 %v1292, %v1305
  %v1313 = vmul.f32 %v1292, %v1309
  %v1314 = vadd.f32 %v1283, %v1310
  %v1315 = vadd.f32 %v1284, %v1311
  %v1316 = vadd.f32 %v1285, %v1312
  %v1317 = vadd.f32 %v1286, %v1313
  %s1318 = scalar_lea.vmem %s2, 200
  %v1319 = vld [vmem:[%s1318] sm:$0x3f]
  %1321 = vset.pattern.permute.xlu0 0
  %1322 = vperm.xlu0 %1321, %v1319
  %v1323 = vpop.permute.xlu0 %1322
  %v1325 = vlaneseq
  %v1326 = vshrl.u32 %v1325, 7
  %v1327 = vsub.s32 2, %v1326
  %v1328 = vrot.slane %v1252, %v1327
  %v1329 = vlaneseq
  %v1330 = vshrl.u32 %v1329, 7
  %v1331 = vsub.s32 2, %v1330
  %v1332 = vrot.slane %v1253, %v1331
  %v1333 = vlaneseq
  %v1334 = vshrl.u32 %v1333, 7
  %v1335 = vsub.s32 2, %v1334
  %v1336 = vrot.slane %v1254, %v1335
  %v1337 = vlaneseq
  %v1338 = vshrl.u32 %v1337, 7
  %v1339 = vsub.s32 2, %v1338
  %v1340 = vrot.slane %v1255, %v1339
  %v1341 = vmul.f32 %v1323, %v1328
  %v1342 = vmul.f32 %v1323, %v1332
  %v1343 = vmul.f32 %v1323, %v1336
  %v1344 = vmul.f32 %v1323, %v1340
  %v1345 = vadd.f32 %v1314, %v1341
  %v1346 = vadd.f32 %v1315, %v1342
  %v1347 = vadd.f32 %v1316, %v1343
  %v1348 = vadd.f32 %v1317, %v1344
  %s1349 = scalar_lea.vmem %s2, 272
  %v1350 = vld [vmem:[%s1349] sm:$0x3f]
  %1352 = vset.pattern.permute.xlu0 0
  %1353 = vperm.xlu0 %1352, %v1350
  %v1354 = vpop.permute.xlu0 %1353
  %v1356 = vlaneseq
  %v1357 = vshrl.u32 %v1356, 7
  %v1358 = vsub.s32 3, %v1357
  %v1359 = vrot.slane %v1252, %v1358
  %v1360 = vlaneseq
  %v1361 = vshrl.u32 %v1360, 7
  %v1362 = vsub.s32 3, %v1361
  %v1363 = vrot.slane %v1253, %v1362
  %v1364 = vlaneseq
  %v1365 = vshrl.u32 %v1364, 7
  %v1366 = vsub.s32 3, %v1365
  %v1367 = vrot.slane %v1254, %v1366
  %v1368 = vlaneseq
  %v1369 = vshrl.u32 %v1368, 7
  %v1370 = vsub.s32 3, %v1369
  %v1371 = vrot.slane %v1255, %v1370
  %v1372 = vmul.f32 %v1354, %v1359
  %v1373 = vmul.f32 %v1354, %v1363
  %v1374 = vmul.f32 %v1354, %v1367
  %v1375 = vmul.f32 %v1354, %v1371
  %v1376 = vadd.f32 %v1345, %v1372
  %v1377 = vadd.f32 %v1346, %v1373
  %v1378 = vadd.f32 %v1347, %v1374
  %v1379 = vadd.f32 %v1348, %v1375
  %1380 = vrot.lane.b32.xlu0 %v20, 111
  %v1381 = vpop.permute.xlu0 %1380
  %1382 = vrot.lane.b32.xlu0 %v24, 111
  %v1383 = vpop.permute.xlu0 %1382
  %1384 = vrot.lane.b32.xlu0 %v21, 111
  %v1385 = vpop.permute.xlu0 %1384
  %1386 = vrot.lane.b32.xlu0 %v25, 111
  %v1387 = vpop.permute.xlu0 %1386
  %vm1388 = vcmp.lt.s32.totalorder %v37, 111
  %v1389 = vsel %vm1388, %v1385, %v1387
  %v1390 = vsel %vm1388, %v1383, %v1385
  %v1391 = vsel %vm1388, %v1381, %v1383
  %v1392 = vsel %vm1388, %v1387, %v1381
  %s1393 = scalar_lea.vmem %s1, 32
  %v1394 = vld [vmem:[%s1393] ss:$8 sm:$0xf]
  %v1396 = vlaneseq
  %v1397 = vshrl.u32 %v1396, 7
  %v1398 = vsub.s32 0, %v1397
  %v1399 = vrot.slane %v1394, %v1398
  %v1400 = vlaneseq
  %v1401 = vshrl.u32 %v1400, 7
  %v1402 = vsub.s32 1, %v1401
  %v1403 = vrot.slane %v1394, %v1402
  %v1404 = vlaneseq
  %v1405 = vshrl.u32 %v1404, 7
  %v1406 = vsub.s32 2, %v1405
  %v1407 = vrot.slane %v1394, %v1406
  %v1408 = vlaneseq
  %v1409 = vshrl.u32 %v1408, 7
  %v1410 = vsub.s32 3, %v1409
  %v1411 = vrot.slane %v1394, %v1410
  %v1416 = vmul.f32 %v1391, %v1399
  %v1417 = vmul.f32 %v1390, %v1403
  %v1418 = vmul.f32 %v1389, %v1407
  %v1419 = vmul.f32 %v1392, %v1411
  %s1420 = scalar_lea.vmem %s2, 64
  %v1421 = vld [vmem:[%s1420] sm:$0x3f]
  %1423 = vset.pattern.permute.xlu0 0
  %1424 = vperm.xlu0 %1423, %v1421
  %v1425 = vpop.permute.xlu0 %1424
  %v1427 = vlaneseq
  %v1428 = vshrl.u32 %v1427, 7
  %v1429 = vsub.s32 0, %v1428
  %v1430 = vrot.slane %v1416, %v1429
  %v1431 = vlaneseq
  %v1432 = vshrl.u32 %v1431, 7
  %v1433 = vsub.s32 0, %v1432
  %v1434 = vrot.slane %v1417, %v1433
  %v1435 = vlaneseq
  %v1436 = vshrl.u32 %v1435, 7
  %v1437 = vsub.s32 0, %v1436
  %v1438 = vrot.slane %v1418, %v1437
  %v1439 = vlaneseq
  %v1440 = vshrl.u32 %v1439, 7
  %v1441 = vsub.s32 0, %v1440
  %v1442 = vrot.slane %v1419, %v1441
  %v1443 = vmul.f32 %v1425, %v1430
  %v1444 = vmul.f32 %v1425, %v1434
  %v1445 = vmul.f32 %v1425, %v1438
  %v1446 = vmul.f32 %v1425, %v1442
  %v1447 = vadd.f32 %v1376, %v1443
  %v1448 = vadd.f32 %v1377, %v1444
  %v1449 = vadd.f32 %v1378, %v1445
  %v1450 = vadd.f32 %v1379, %v1446
  %s1451 = scalar_lea.vmem %s2, 136
  %v1452 = vld [vmem:[%s1451] sm:$0x3f]
  %1454 = vset.pattern.permute.xlu0 0
  %1455 = vperm.xlu0 %1454, %v1452
  %v1456 = vpop.permute.xlu0 %1455
  %v1458 = vlaneseq
  %v1459 = vshrl.u32 %v1458, 7
  %v1460 = vsub.s32 1, %v1459
  %v1461 = vrot.slane %v1416, %v1460
  %v1462 = vlaneseq
  %v1463 = vshrl.u32 %v1462, 7
  %v1464 = vsub.s32 1, %v1463
  %v1465 = vrot.slane %v1417, %v1464
  %v1466 = vlaneseq
  %v1467 = vshrl.u32 %v1466, 7
  %v1468 = vsub.s32 1, %v1467
  %v1469 = vrot.slane %v1418, %v1468
  %v1470 = vlaneseq
  %v1471 = vshrl.u32 %v1470, 7
  %v1472 = vsub.s32 1, %v1471
  %v1473 = vrot.slane %v1419, %v1472
  %v1474 = vmul.f32 %v1456, %v1461
  %v1475 = vmul.f32 %v1456, %v1465
  %v1476 = vmul.f32 %v1456, %v1469
  %v1477 = vmul.f32 %v1456, %v1473
  %v1478 = vadd.f32 %v1447, %v1474
  %v1479 = vadd.f32 %v1448, %v1475
  %v1480 = vadd.f32 %v1449, %v1476
  %v1481 = vadd.f32 %v1450, %v1477
  %s1482 = scalar_lea.vmem %s2, 208
  %v1483 = vld [vmem:[%s1482] sm:$0x3f]
  %1485 = vset.pattern.permute.xlu0 0
  %1486 = vperm.xlu0 %1485, %v1483
  %v1487 = vpop.permute.xlu0 %1486
  %v1489 = vlaneseq
  %v1490 = vshrl.u32 %v1489, 7
  %v1491 = vsub.s32 2, %v1490
  %v1492 = vrot.slane %v1416, %v1491
  %v1493 = vlaneseq
  %v1494 = vshrl.u32 %v1493, 7
  %v1495 = vsub.s32 2, %v1494
  %v1496 = vrot.slane %v1417, %v1495
  %v1497 = vlaneseq
  %v1498 = vshrl.u32 %v1497, 7
  %v1499 = vsub.s32 2, %v1498
  %v1500 = vrot.slane %v1418, %v1499
  %v1501 = vlaneseq
  %v1502 = vshrl.u32 %v1501, 7
  %v1503 = vsub.s32 2, %v1502
  %v1504 = vrot.slane %v1419, %v1503
  %v1505 = vmul.f32 %v1487, %v1492
  %v1506 = vmul.f32 %v1487, %v1496
  %v1507 = vmul.f32 %v1487, %v1500
  %v1508 = vmul.f32 %v1487, %v1504
  %v1509 = vadd.f32 %v1478, %v1505
  %v1510 = vadd.f32 %v1479, %v1506
  %v1511 = vadd.f32 %v1480, %v1507
  %v1512 = vadd.f32 %v1481, %v1508
  %s1513 = scalar_lea.vmem %s2, 280
  %v1514 = vld [vmem:[%s1513] sm:$0x3f]
  %1516 = vset.pattern.permute.xlu0 0
  %1517 = vperm.xlu0 %1516, %v1514
  %v1518 = vpop.permute.xlu0 %1517
  %v1520 = vlaneseq
  %v1521 = vshrl.u32 %v1520, 7
  %v1522 = vsub.s32 3, %v1521
  %v1523 = vrot.slane %v1416, %v1522
  %v1524 = vlaneseq
  %v1525 = vshrl.u32 %v1524, 7
  %v1526 = vsub.s32 3, %v1525
  %v1527 = vrot.slane %v1417, %v1526
  %v1528 = vlaneseq
  %v1529 = vshrl.u32 %v1528, 7
  %v1530 = vsub.s32 3, %v1529
  %v1531 = vrot.slane %v1418, %v1530
  %v1532 = vlaneseq
  %v1533 = vshrl.u32 %v1532, 7
  %v1534 = vsub.s32 3, %v1533
  %v1535 = vrot.slane %v1419, %v1534
  %v1536 = vmul.f32 %v1518, %v1523
  %v1537 = vmul.f32 %v1518, %v1527
  %v1538 = vmul.f32 %v1518, %v1531
  %v1539 = vmul.f32 %v1518, %v1535
  %v1540 = vadd.f32 %v1509, %v1536
  %v1541 = vadd.f32 %v1510, %v1537
  %v1542 = vadd.f32 %v1511, %v1538
  %v1543 = vadd.f32 %v1512, %v1539
  %vm1544 = vcmask 1045504
  %v1545 = vsel %vm1544, %v1540, 0.0
  %v1546 = vsel %vm1544, %v1541, 0.0
  %v1547 = vadd.f32 %v1545, %v1546
  %v1548 = vsel %vm1544, %v1542, 0.0
  %v1549 = vadd.f32 %v1547, %v1548
  %v1550 = vsel %vm1544, %v1543, 0.0
  %v1551 = vadd.f32 %v1549, %v1550
  %1552 = vadd.xlane.f32.xlu0 %v1551
  %v1553 = vpop.xlane.xlu0 %1552
  %v1554 = vrcp.pop 512.0
  %v1555 = vmul.f32 %v1553, %v1554
  %v1556 = vmul.f32 %v1540, %v1540
  %v1557 = vmul.f32 %v1541, %v1541
  %v1558 = vmul.f32 %v1542, %v1542
  %v1559 = vmul.f32 %v1543, %v1543
  %v1560 = vsel %vm1544, %v1556, 0.0
  %v1561 = vsel %vm1544, %v1557, 0.0
  %v1562 = vadd.f32 %v1560, %v1561
  %v1563 = vsel %vm1544, %v1558, 0.0
  %v1564 = vadd.f32 %v1562, %v1563
  %v1565 = vsel %vm1544, %v1559, 0.0
  %v1566 = vadd.f32 %v1564, %v1565
  %1567 = vadd.xlane.f32.xlu0 %v1566
  %v1568 = vpop.xlane.xlu0 %1567
  %v1569 = vmul.f32 %v1568, %v1554
  %v1570 = vmul.f32 %v1555, %v1555
  %v1571 = vsub.f32 %v1569, %v1570
  %v1572 = vld [vmem:[%s3] sm:$0x3f]
  %v1573 = vadd.f32 %v1571, 1e-05
  %v1574 = vrsqrt.pop %v1573
  %v1575 = vmul.f32 %v1572, %v1574
  %v1576 = vld [vmem:[%s4] sm:$0x3f]
  %v1577 = vmul.f32 %v1555, %v1575
  %v1578 = vsub.f32 %v1576, %v1577
  %1580 = vset.pattern.permute.xlu0 0
  %1581 = vperm.xlu0 %1580, %v1575
  %v1582 = vpop.permute.xlu0 %1581
  %v1584 = vmul.f32 %v1540, %v1582
  %v1585 = vmul.f32 %v1541, %v1582
  %v1586 = vmul.f32 %v1542, %v1582
  %v1587 = vmul.f32 %v1543, %v1582
  %1589 = vset.pattern.permute.xlu0 0
  %1590 = vperm.xlu0 %1589, %v1578
  %v1591 = vpop.permute.xlu0 %1590
  %v1593 = vadd.f32 %v1584, %v1591
  %v1594 = vadd.f32 %v1585, %v1591
  %v1595 = vadd.f32 %v1586, %v1591
  %v1596 = vadd.f32 %v1587, %v1591
  %v1597 = vmax.f32 %v1593, 0.0
  %v1598 = vmax.f32 %v1594, 0.0
  %v1599 = vmax.f32 %v1595, 0.0
  %v1600 = vmax.f32 %v1596, 0.0
  %1601 = vst [vmem:[%s5] sm:$0x3f] %v1597
  %1602 = vst [vmem:[%s5 + $0x8] sm:$0x3f] %v1598
  %1603 = vst [vmem:[%s5 + $0x10] sm:$0x3f] %v1599
  %1604 = vst [vmem:[%s5 + $0x18] sm:$0x3f] %v1600
  // Predicated region
  $region22: #{preprocessing_module.1} parent=0 // pred_check
    _
  $region23: #{preprocessing_module.1} parent=0 // pred_check_branch
    %1606 = sbr.rel (0) target = $region25
  $region24: #{preprocessing_module.1} parent=0 // pred_region
    _
  $region25: #{preprocessing_module.1} parent=0 // pred_fallthru
    _
  // Predicated region
  $region26: #{preprocessing_module.1} parent=0 // pred_check
    _
  $region27: #{preprocessing_module.1} parent=0 // pred_check_branch
    %1608 = sbr.rel (0) target = $region29
  $region28: #{preprocessing_module.1} parent=0 // pred_region
    _
  $region29: #{preprocessing_module.1} parent=0 // pred_fallthru
    _

</llo_original>
